<compile_context>
chip_gen: v7x
topology: tpu7x:2x2x1
jax: 0.10.0
libtpu: 0.0.40
codegen_flags: <defaults>
</compile_context>

<pallas_src>
import math

import numpy as np
import jax
import jax.numpy as jnp
from jax.experimental import pallas as pl
from jax.experimental.pallas import tpu as pltpu


# ----------------------------------------------------------------------------- #
# helpers
# ----------------------------------------------------------------------------- #
def _divisor_tile(total, target):
    """Largest divisor of `total` that is <= target and a multiple of 8;
    falls back to `total` (single block).  Keeps BlockSpec dims legal."""
    if total <= target:
        return total
    for t in range(target, 7, -1):
        if total % t == 0 and t % 8 == 0:
            return t
    # TODO(synk): pathological sizes (no multiple-of-8 divisor) fall back to one
    # giant block; a masked remainder tile would be needed for such shapes.
    return total


# ----------------------------------------------------------------------------- #
# Kernel 1: query projection + per-head softmax + sampling locations
#   out = [loc_x (HLP) | loc_y (HLP) | attn (HLP)]   (packed, lane-dense)
# ----------------------------------------------------------------------------- #
def _make_query_proj_kernel(n_heads, n_levels, n_points):
    LP = n_levels * n_points
    HLP = n_heads * LP

    def kernel(q_ref, ref_ref, woa_ref, boa_ref, exp_ref, invwh_ref, out_ref):
        q = q_ref[...]                                                   # (tm, C) f32
        # kept f32 on purpose: sampling-location precision drives bilinear weights
        y = jnp.dot(q, woa_ref[...], preferred_element_type=jnp.float32) + boa_ref[...]
        off = y[:, :2 * HLP]                                             # [off_x | off_y]
        lg = y[:, 2 * HLP:]                                              # attn logits

        # sampling locations fused in-kernel:
        # per-level reference expansion via an exact 0/1 selection matmul.
        ref_e = jnp.dot(ref_ref[...], exp_ref[...],
                        preferred_element_type=jnp.float32)              # (tm, 2*HLP)
        loc = ref_e + off * invwh_ref[...]

        # exact per-head softmax: head columns are contiguous LP blocks in the
        # native (h, l, p) ordering -> per-head max (not global row max).
        attn_blocks = []
        for h in range(n_heads):
            blk = lg[:, h * LP:(h + 1) * LP]
            m = jnp.max(blk, axis=-1, keepdims=True)
            e = jnp.exp(blk - m)
            s = jnp.sum(e, axis=-1, keepdims=True)
            attn_blocks.append(e * pl.reciprocal(s, approx=True))

        out_ref[...] = jnp.concatenate([loc] + attn_blocks, axis=1).astype(out_ref.dtype)

    return kernel


def pallas_query_proj(q2d, ref2d, w_oa, b_oa, expand, invwh,
                      n_heads, n_levels, n_points, row_tile=512):
    M, C = q2d.shape
    HLP = n_heads * n_levels * n_points
    nL2 = ref2d.shape[1]
    tm = _divisor_tile(M, row_tile)
    kernel = _make_query_proj_kernel(n_heads, n_levels, n_points)
    return pl.pallas_call(
        kernel,
        out_shape=jax.ShapeDtypeStruct((M, 3 * HLP), jnp.float32),
        grid=(M // tm,),
        in_specs=[
            pl.BlockSpec((tm, C), lambda i: (i, 0)),                     # query
            pl.BlockSpec((tm, nL2), lambda i: (i, 0)),                   # ref points
            pl.BlockSpec((C, 3 * HLP), lambda i: (0, 0)),                # W_oa
            pl.BlockSpec((1, 3 * HLP), lambda i: (0, 0)),                # b_oa
            pl.BlockSpec((nL2, 2 * HLP), lambda i: (0, 0)),              # level expand
            pl.BlockSpec((1, 2 * HLP), lambda i: (0, 0)),                # 1/W, 1/H per col
        ],
        out_specs=pl.BlockSpec((tm, 3 * HLP), lambda i: (i, 0)),
        compiler_params=pltpu.CompilerParams(dimension_semantics=("parallel",)),
    )(q2d, ref2d, w_oa, b_oa.reshape(1, -1), expand, invwh)


# ----------------------------------------------------------------------------- #
# Kernel 2: value projection (stored bf16)
# ----------------------------------------------------------------------------- #
def _value_proj_kernel(x_ref, w_ref, b_ref, o_ref):
    x = x_ref[...].astype(jnp.bfloat16)
    w = w_ref[...].astype(jnp.bfloat16)
    o_ref[...] = (jnp.dot(x, w, preferred_element_type=jnp.float32)
                  + b_ref[...]).astype(o_ref.dtype)
    # TODO(synk): input_padding_mask (value.masked_fill) branch not implemented
    # (mask is None in the tested path).


def pallas_value_proj(x2d, w_v, b_v, out_dtype=jnp.bfloat16, row_tile=512):
    M, C = x2d.shape
    tm = _divisor_tile(M, row_tile)
    return pl.pallas_call(
        _value_proj_kernel,
        out_shape=jax.ShapeDtypeStruct((M, C), out_dtype),
        grid=(M // tm,),
        in_specs=[pl.BlockSpec((tm, C), lambda i: (i, 0)),
                  pl.BlockSpec((C, C), lambda i: (0, 0)),
                  pl.BlockSpec((1, C), lambda i: (0, 0))],
        out_specs=pl.BlockSpec((tm, C), lambda i: (i, 0)),
        compiler_params=pltpu.CompilerParams(dimension_semantics=("parallel",)),
    )(x2d, w_v, b_v.reshape(1, -1))


# ----------------------------------------------------------------------------- #
# Kernel 3: deformable-attention core + output projection
#   - value streamed per level from HBM (pl.ANY) with double-buffered DMA
#   - HW axis chunked inside lax.fori_loop (S never materializes at (TQ, HW))
# ----------------------------------------------------------------------------- #
def _make_deform_core_kernel(spatial_shapes, level_start, n_heads, n_levels,
                             n_points, d_head, hw_chunk):
    HLP = n_heads * n_levels * n_points
    C = n_heads * d_head
    max_hw = max(h * w for h, w in spatial_shapes)

    def kernel(lap_ref, whc_ref, wout_ref, bout_ref, value_hbm, out_ref, vbuf, sem):
        b = pl.program_id(0)

        def level_copy(l):
            HW = spatial_shapes[l][0] * spatial_shapes[l][1]
            slot = l % 2
            return pltpu.make_async_copy(
                value_hbm.at[b, pl.ds(level_start[l], HW), :],
                vbuf.at[slot, pl.ds(0, HW), :],
                sem.at[slot])

        level_copy(0).start()                               # prefetch level 0

        lap = lap_ref[0]                                    # (TQ, 3*HLP)
        locx = lap[:, :HLP]
        locy = lap[:, HLP:2 * HLP]
        attn = lap[:, 2 * HLP:]
        TQ = locx.shape[0]

        whc = whc_ref[...]                                  # (1, 2*HLP) [W | H] per col
        w_f = whc[:, :HLP]
        h_f = whc[:, HLP:]
        w_i = w_f.astype(jnp.int32)
        h_i = h_f.astype(jnp.int32)

        # --- bilinear corner math, vectorized once over the full (TQ, HLP) width ---
        # grid_sample(align_corners=False, padding_mode='zeros') semantics.
        x_im = locx * w_f - 0.5
        y_im = locy * h_f - 0.5
        x0f = jnp.floor(x_im)
        y0f = jnp.floor(y_im)
        dx = x_im - x0f
        dy = y_im - y0f
        x0 = x0f.astype(jnp.int32)
        y0 = y0f.astype(jnp.int32)

        vx0 = (x0 >= 0) & (x0 < w_i)
        vx1 = (x0 + 1 >= 0) & (x0 + 1 < w_i)
        vy0 = (y0 >= 0) & (y0 < h_i)
        vy1 = (y0 + 1 >= 0) & (y0 + 1 < h_i)

        # corner weights with attention + validity folded in (f32)
        w00 = jnp.where(vx0 & vy0, attn * (1.0 - dx) * (1.0 - dy), 0.0)
        w01 = jnp.where(vx1 & vy0, attn * dx * (1.0 - dy), 0.0)
        w10 = jnp.where(vx0 & vy1, attn * (1.0 - dx) * dy, 0.0)
        w11 = jnp.where(vx1 & vy1, attn * dx * dy, 0.0)
        idx00 = y0 * w_i + x0                               # flat index of top-left corner

        head_acc = [jnp.zeros((TQ, d_head), jnp.float32) for _ in range(n_heads)]

        for l in range(n_levels):
            H, W = spatial_shapes[l]
            HW = H * W
            slot = l % 2
            level_copy(l).wait()
            if l + 1 < n_levels:
                level_copy(l + 1).start()                   # overlap next level DMA

            vslot = vbuf.at[slot]
            chunk = _divisor_tile(HW, hw_chunk)
            n_chunks = HW // chunk

            def process_chunk(c0, accs, _slot=slot, _l=l, _W=W, _chunk=chunk,
                              _vslot=vslot):
                v_chunk = _vslot[pl.ds(c0, _chunk), :]                    # (chunk, C) bf16
                iota_c = jax.lax.broadcasted_iota(jnp.int32, (TQ, _chunk), 1) + c0
                new_accs = []
                for h in range(n_heads):
                    S = jnp.zeros((TQ, _chunk), jnp.float32)
                    for p in range(n_points):
                        # NOTE: heads/points stay as small static loops; at larger
                        # production configs convert to lax.fori_loop to bound the
                        # unroll / vreg live ranges.
                        col = (h * n_levels + _l) * n_points + p
                        diff = iota_c - idx00[:, col:col + 1]
                        S = (S
                             + jnp.where(diff == 0, w00[:, col:col + 1], 0.0)
                             + jnp.where(diff == 1, w01[:, col:col + 1], 0.0)
                             + jnp.where(diff == _W, w10[:, col:col + 1], 0.0)
                             + jnp.where(diff == _W + 1, w11[:, col:col + 1], 0.0))
                    hv = jnp.dot(S.astype(jnp.bfloat16),
                                 v_chunk[:, h * d_head:(h + 1) * d_head],
                                 preferred_element_type=jnp.float32)
                    new_accs.append(accs[h] + hv)
                return tuple(new_accs)

            if n_chunks == 1:
                head_acc = list(process_chunk(0, tuple(head_acc)))
            else:
                def body(ci, accs):
                    c0 = pl.multiple_of(ci * chunk, chunk)
                    return process_chunk(c0, accs)
                head_acc = list(jax.lax.fori_loop(0, n_chunks, body, tuple(head_acc)))

        # heads occupy disjoint column blocks -> one C x C output projection
        acc = jnp.concatenate(head_acc, axis=1)             # (TQ, C) f32
        out = jnp.dot(acc.astype(jnp.bfloat16), wout_ref[...],
                      preferred_element_type=jnp.float32) + bout_ref[...]
        out_ref[0] = out.astype(out_ref.dtype)

    return kernel, max_hw


def pallas_deform_attn_core(lap, value, whc, w_out_bf16, b_out,
                            spatial_shapes, level_start_index,
                            n_heads, n_levels, n_points,
                            q_tile=512, hw_chunk=1024):
    N, Lq, _ = lap.shape
    Len_in, C = value.shape[1], value.shape[2]
    HLP = n_heads * n_levels * n_points
    d_head = C // n_heads
    tq = _divisor_tile(Lq, q_tile)
    nq = Lq // tq
    kernel, max_hw = _make_deform_core_kernel(
        tuple(spatial_shapes), tuple(level_start_index),
        n_heads, n_levels, n_points, d_head, hw_chunk)

    flops = 2 * N * Lq * Len_in * C + 2 * N * Lq * C * C
    bytes_accessed = (lap.size * 4 + N * Lq * C * 4
                      + N * nq * Len_in * C * 2 + C * C * 2)
    cost = pl.CostEstimate(flops=int(flops), transcendentals=0,
                           bytes_accessed=int(bytes_accessed))

    return pl.pallas_call(
        kernel,
        out_shape=jax.ShapeDtypeStruct((N, Lq, C), jnp.float32),
        grid=(N, nq),
        in_specs=[
            pl.BlockSpec((1, tq, 3 * HLP), lambda b, q: (b, q, 0)),      # loc_x|loc_y|attn
            pl.BlockSpec((1, 2 * HLP), lambda b, q: (0, 0)),             # W/H per column
            pl.BlockSpec((C, C), lambda b, q: (0, 0)),                   # W_out (bf16)
            pl.BlockSpec((1, C), lambda b, q: (0, 0)),                   # b_out
            pl.BlockSpec(memory_space=pl.ANY),                           # value (HBM)
        ],
        out_specs=pl.BlockSpec((1, tq, C), lambda b, q: (b, q, 0)),
        scratch_shapes=[pltpu.VMEM((2, max_hw, C), value.dtype),         # level double-buffer
                        pltpu.SemaphoreType.DMA((2,))],
        compiler_params=pltpu.CompilerParams(
            dimension_semantics=("parallel", "parallel"),
            vmem_limit_bytes=48 * 1024 * 1024),
        cost_estimate=cost,
    )(lap, whc, w_out_bf16, b_out.reshape(1, C), value)


# ----------------------------------------------------------------------------- #
# MSDeformAttn.forward (Pallas kernels + thin host glue)
# ----------------------------------------------------------------------------- #
def ms_deform_attn_forward(params, query, reference_points, input_flatten,
                           spatial_shapes, level_start_index,
                           n_heads, n_levels, n_points,
                           input_padding_mask=None, q_tile=512, hw_chunk=1024):
    N, Lq, C = query.shape
    _, Len_in, _ = input_flatten.shape
    assert C % n_heads == 0
    assert sum(h * w for h, w in spatial_shapes) == Len_in
    assert reference_points.shape[-1] == 2
    # TODO(synk): reference_points box form (last dim == 4) not implemented.
    # TODO(synk): input_padding_mask (value.masked_fill) not implemented (None path).
    HLP = n_heads * n_levels * n_points

    # Pack sampling_offsets + attention_weights into one wide matrix:
    # columns = [off_x (HLP) | off_y (HLP) | attn_logits (HLP)], keeping the native
    # head-major order col = (h*n_levels + l)*n_points + p  (one-time weight shuffle).
    w_off3 = params["w_off"].reshape(C, HLP, 2)
    b_off2 = params["b_off"].reshape(HLP, 2)
    w_oa = jnp.concatenate([w_off3[:, :, 0], w_off3[:, :, 1], params["w_attn"]], axis=1)
    b_oa = jnp.concatenate([b_off2[:, 0], b_off2[:, 1], params["b_attn"]], axis=0)

    # small per-column constants (level of a column, W/H, 1/W, 1/H, ref expansion)
    lvl_of_col = np.asarray([(c // n_points) % n_levels for c in range(HLP)])
    shapes_np = np.asarray(spatial_shapes, np.float32)                   # (nL, 2) [H, W]
    Wc = shapes_np[lvl_of_col, 1]
    Hc = shapes_np[lvl_of_col, 0]
    invwh = jnp.asarray(np.concatenate([1.0 / Wc, 1.0 / Hc])[None, :], jnp.float32)
    whc = jnp.asarray(np.concatenate([Wc, Hc])[None, :], jnp.float32)
    expand_np = np.zeros((2 * n_levels, 2 * HLP), np.float32)
    expand_np[lvl_of_col, np.arange(HLP)] = 1.0
    expand_np[n_levels + lvl_of_col, HLP + np.arange(HLP)] = 1.0
    expand = jnp.asarray(expand_np)

    # K1: offsets/attn projection + per-head softmax + sampling locations
    q2d = query.reshape(N * Lq, C)
    ref2d = jnp.concatenate([reference_points[..., 0], reference_points[..., 1]],
                            axis=-1).reshape(N * Lq, 2 * n_levels)
    lap = pallas_query_proj(q2d, ref2d, w_oa, b_oa, expand, invwh,
                            n_heads, n_levels, n_points).reshape(N, Lq, 3 * HLP)

    # K2: value projection, stored bf16
    value = pallas_value_proj(input_flatten.reshape(N * Len_in, C),
                              params["w_value"], params["b_value"]).reshape(N, Len_in, C)

    # K3: deformable sampling + output projection
    return pallas_deform_attn_core(lap, value, whc,
                                   params["w_out"].astype(jnp.bfloat16),
                                   params["b_out"],
                                   spatial_shapes, level_start_index,
                                   n_heads, n_levels, n_points,
                                   q_tile=q_tile, hw_chunk=hw_chunk)


# ----------------------------------------------------------------------------- #
# Pure-JAX f32 reference (gather-based bilinear sampling) for validation
# ----------------------------------------------------------------------------- #
def reference_forward(params, query, reference_points, input_flatten,
                      spatial_shapes, level_start_index, n_heads, n_levels, n_points):
    N, Lq, C = query.shape
    Len_in = input_flatten.shape[1]
    d_head = C // n_heads
    value = input_flatten @ params["w_value"] + params["b_value"]
    off = (query @ params["w_off"] + params["b_off"]).reshape(
        N, Lq, n_heads, n_levels, n_points, 2)
    aw = (query @ params["w_attn"] + params["b_attn"]).reshape(
        N, Lq, n_heads, n_levels * n_points)
    aw = jax.nn.softmax(aw, axis=-1).reshape(N, Lq, n_heads, n_levels, n_points)
    shapes = jnp.asarray(spatial_shapes, jnp.float32)
    normalizer = jnp.stack([shapes[:, 1], shapes[:, 0]], -1)
    samp = (reference_points[:, :, None, :, None, :]
            + off / normalizer[None, None, None, :, None, :])
    value_h = value.reshape(N, Len_in, n_heads, d_head)
    out = jnp.zeros((N, Lq, n_heads, d_head), jnp.float32)
    for l, (H, W) in enumerate(spatial_shapes):
        start = level_start_index[l]
        v_l = value_h[:, start:start + H * W].reshape(N, H, W, n_heads, d_head)
        x = samp[:, :, :, l, :, 0] * W - 0.5
        y = samp[:, :, :, l, :, 1] * H - 0.5
        x0 = jnp.floor(x); y0 = jnp.floor(y)
        dx = x - x0; dy = y - y0
        x0i = x0.astype(jnp.int32); y0i = y0.astype(jnp.int32)
        b_idx = jnp.arange(N).reshape(N, 1, 1, 1)
        h_idx = jnp.arange(n_heads).reshape(1, 1, n_heads, 1)
        for xi, yi, cw in ((x0i, y0i, (1 - dx) * (1 - dy)),
                           (x0i + 1, y0i, dx * (1 - dy)),
                           (x0i, y0i + 1, (1 - dx) * dy),
                           (x0i + 1, y0i + 1, dx * dy)):
            valid = ((xi >= 0) & (xi < W) & (yi >= 0) & (yi < H)).astype(jnp.float32)
            xc = jnp.clip(xi, 0, W - 1)
            yc = jnp.clip(yi, 0, H - 1)
            vals = v_l[b_idx, yc, xc, h_idx]                  # (N, Lq, nH, nP, dH)
            w = (aw[:, :, :, l, :] * cw * valid)[..., None]
            out = out + jnp.sum(w * vals, axis=3)
    attn_out = out.reshape(N, Lq, C)
    return attn_out @ params["w_out"] + params["b_out"]


# ----------------------------------------------------------------------------- #
# Parameter init (weights stored as (in, out); y = x @ W + b)
# ----------------------------------------------------------------------------- #
def init_params(key, d_model, n_heads, n_levels, n_points):
    k_off, k_attn, k_val, k_out = jax.random.split(key, 4)

    def xavier(k, shape):
        a = math.sqrt(6.0 / (shape[0] + shape[1]))
        return jax.random.uniform(k, shape, jnp.float32, -a, a)

    hlp = n_heads * n_levels * n_points
    # sampling_offsets bias: directional grid init (MSDeformAttn._reset_parameters)
    thetas = np.arange(n_heads, dtype=np.float32) * (2.0 * math.pi / n_heads)
    grid = np.stack([np.cos(thetas), np.sin(thetas)], -1)
    grid = grid / np.abs(grid).max(-1, keepdims=True)
    grid = np.tile(grid.reshape(n_heads, 1, 1, 2), (1, n_levels, n_points, 1))
    for i in range(n_points):
        grid[:, :, i, :] *= i + 1

    return dict(
        # small random weights (instead of the paper's zero init) for a non-trivial test
        w_off=0.01 * jax.random.normal(k_off, (d_model, hlp * 2), jnp.float32),
        b_off=jnp.asarray(grid.reshape(-1), jnp.float32),
        w_attn=0.02 * jax.random.normal(k_attn, (d_model, hlp), jnp.float32),
        b_attn=jnp.zeros((hlp,), jnp.float32),
        w_value=xavier(k_val, (d_model, d_model)),
        b_value=jnp.zeros((d_model,), jnp.float32),
        w_out=xavier(k_out, (d_model, d_model)),
        b_out=jnp.zeros((d_model,), jnp.float32),
    )


# ----------------------------------------------------------------------------- #
if __name__ == "__main__":
    d_model = 32
    n_heads, n_levels, n_points = 4, 2, 2
    spatial_shapes = ((8, 8), (4, 4))             # (H_l, W_l) per level
    level_start_index = (0, 64)
    N = 2
    Len_in = sum(h * w for h, w in spatial_shapes)   # 80
    Lq = 64                                          # query length != Len_in on purpose

    key = jax.random.PRNGKey(0)
    kp, kq, kf, kr = jax.random.split(key, 4)
    params = init_params(kp, d_model, n_heads, n_levels, n_points)
    query = jax.random.normal(kq, (N, Lq, d_model), jnp.float32)
    input_flatten = jax.random.normal(kf, (N, Len_in, d_model), jnp.float32)
    reference_points = jax.random.uniform(kr, (N, Lq, n_levels, 2), jnp.float32)

    # hw_chunk=32 so the HW-chunking fori_loop path is exercised on level 0 (HW=64)
    out = ms_deform_attn_forward(params, query, reference_points, input_flatten,
                                 spatial_shapes, level_start_index,
                                 n_heads, n_levels, n_points, hw_chunk=32)
    out = jax.block_until_ready(out)

    ref = jax.block_until_ready(
        reference_forward(params, query, reference_points, input_flatten,
                          spatial_shapes, level_start_index,
                          n_heads, n_levels, n_points))
    np.testing.assert_allclose(np.asarray(out), np.asarray(ref), rtol=2e-2, atol=2e-2)
    print("KERNEL_OK")
</pallas_src>

<mosaic_0001>
module attributes {stable_mosaic.version = 11 : i64} {
  func.func @kernel(%arg0: i32, %arg1: memref<128x32xf32, #tpu.memory_space<vmem>>, %arg2: memref<128x4xf32, #tpu.memory_space<vmem>>, %arg3: memref<32x48xf32, #tpu.memory_space<vmem>>, %arg4: memref<1x48xf32, #tpu.memory_space<vmem>>, %arg5: memref<4x32xf32, #tpu.memory_space<vmem>>, %arg6: memref<1x32xf32, #tpu.memory_space<vmem>>, %arg7: memref<128x48xf32, #tpu.memory_space<vmem>>) attributes {dimension_semantics = [#tpu.dimension_semantics<parallel>], iteration_bounds = array<i64: 1>, scalar_prefetch = 0 : i64, scratch_operands = 0 : i64, tpu.core_type = #tpu.core_type<tc>, window_params = [{transform_indices = @transform_0, window_bounds = array<i64: 128, 32>}, {transform_indices = @transform_1, window_bounds = array<i64: 128, 4>}, {pipeline_mode = #tpu.pipeline_mode<synchronous>, transform_indices = @transform_2, window_bounds = array<i64: 32, 48>}, {pipeline_mode = #tpu.pipeline_mode<synchronous>, transform_indices = @transform_3, window_bounds = array<i64: 1, 48>}, {pipeline_mode = #tpu.pipeline_mode<synchronous>, transform_indices = @transform_4, window_bounds = array<i64: 4, 32>}, {pipeline_mode = #tpu.pipeline_mode<synchronous>, transform_indices = @transform_5, window_bounds = array<i64: 1, 32>}, {transform_indices = @transform_6, window_bounds = array<i64: 128, 48>}]} {
    %c0 = arith.constant 0 : index
    %c0_0 = arith.constant 0 : index
    %0 = vector.load %arg1[%c0, %c0_0] : memref<128x32xf32, #tpu.memory_space<vmem>>, vector<128x32xf32>
    %c0_1 = arith.constant 0 : index
    %c0_2 = arith.constant 0 : index
    %1 = vector.load %arg3[%c0_1, %c0_2] : memref<32x48xf32, #tpu.memory_space<vmem>>, vector<32x48xf32>
    %cst = arith.constant dense<0.000000e+00> : vector<128x48xf32>
    %2 = tpu.matmul %0, %1, %cst {dimension_numbers = #tpu.dot_dimension_numbers<[1], [0], [0], [1], [0, 0, 1, 1], [], []>} : vector<128x32xf32>, vector<32x48xf32>, vector<128x48xf32> -> vector<128x48xf32>
    %c0_3 = arith.constant 0 : index
    %c0_4 = arith.constant 0 : index
    %3 = vector.load %arg4[%c0_3, %c0_4] : memref<1x48xf32, #tpu.memory_space<vmem>>, vector<1x48xf32>
    %4 = vector.broadcast %3 : vector<1x48xf32> to vector<128x48xf32>
    %5 = arith.addf %2, %4 : vector<128x48xf32>
    %6 = vector.extract_strided_slice %5 {offsets = [0, 0], sizes = [128, 32], strides = [1, 1]} : vector<128x48xf32> to vector<128x32xf32>
    %7 = vector.extract_strided_slice %5 {offsets = [0, 32], sizes = [128, 16], strides = [1, 1]} : vector<128x48xf32> to vector<128x16xf32>
    %c0_5 = arith.constant 0 : index
    %c0_6 = arith.constant 0 : index
    %8 = vector.load %arg2[%c0_5, %c0_6] : memref<128x4xf32, #tpu.memory_space<vmem>>, vector<128x4xf32>
    %c0_7 = arith.constant 0 : index
    %c0_8 = arith.constant 0 : index
    %9 = vector.load %arg5[%c0_7, %c0_8] : memref<4x32xf32, #tpu.memory_space<vmem>>, vector<4x32xf32>
    %cst_9 = arith.constant dense<0.000000e+00> : vector<128x32xf32>
    %10 = tpu.matmul %8, %9, %cst_9 {dimension_numbers = #tpu.dot_dimension_numbers<[1], [0], [0], [1], [0, 0, 1, 1], [], []>} : vector<128x4xf32>, vector<4x32xf32>, vector<128x32xf32> -> vector<128x32xf32>
    %c0_10 = arith.constant 0 : index
    %c0_11 = arith.constant 0 : index
    %11 = vector.load %arg6[%c0_10, %c0_11] : memref<1x32xf32, #tpu.memory_space<vmem>>, vector<1x32xf32>
    %12 = vector.broadcast %11 : vector<1x32xf32> to vector<128x32xf32>
    %13 = arith.mulf %6, %12 : vector<128x32xf32>
    %14 = arith.addf %10, %13 : vector<128x32xf32>
    %15 = vector.extract_strided_slice %7 {offsets = [0, 0], sizes = [128, 4], strides = [1, 1]} : vector<128x16xf32> to vector<128x4xf32>
    %cst_12 = arith.constant dense<0xFF800000> : vector<128xf32>
    %16 = vector.multi_reduction <maximumf>, %15, %cst_12 [1] : vector<128x4xf32> to vector<128xf32>
    %17 = vector.shape_cast %16 : vector<128xf32> to vector<128x1xf32>
    %18 = vector.broadcast %17 : vector<128x1xf32> to vector<128x4xf32>
    %19 = arith.subf %15, %18 : vector<128x4xf32>
    %20 = math.exp %19 : vector<128x4xf32>
    %cst_13 = arith.constant dense<0.000000e+00> : vector<128xf32>
    %21 = vector.multi_reduction <add>, %20, %cst_13 [1] : vector<128x4xf32> to vector<128xf32>
    %22 = vector.shape_cast %21 : vector<128xf32> to vector<128x1xf32>
    %23 = tpu.reciprocal %22 {approx = true} : vector<128x1xf32> -> vector<128x1xf32>
    %24 = vector.broadcast %23 : vector<128x1xf32> to vector<128x4xf32>
    %25 = arith.mulf %20, %24 : vector<128x4xf32>
    %26 = vector.extract_strided_slice %7 {offsets = [0, 4], sizes = [128, 4], strides = [1, 1]} : vector<128x16xf32> to vector<128x4xf32>
    %cst_14 = arith.constant dense<0xFF800000> : vector<128xf32>
    %27 = vector.multi_reduction <maximumf>, %26, %cst_14 [1] : vector<128x4xf32> to vector<128xf32>
    %28 = vector.shape_cast %27 : vector<128xf32> to vector<128x1xf32>
    %29 = vector.broadcast %28 : vector<128x1xf32> to vector<128x4xf32>
    %30 = arith.subf %26, %29 : vector<128x4xf32>
    %31 = math.exp %30 : vector<128x4xf32>
    %cst_15 = arith.constant dense<0.000000e+00> : vector<128xf32>
    %32 = vector.multi_reduction <add>, %31, %cst_15 [1] : vector<128x4xf32> to vector<128xf32>
    %33 = vector.shape_cast %32 : vector<128xf32> to vector<128x1xf32>
    %34 = tpu.reciprocal %33 {approx = true} : vector<128x1xf32> -> vector<128x1xf32>
    %35 = vector.broadcast %34 : vector<128x1xf32> to vector<128x4xf32>
    %36 = arith.mulf %31, %35 : vector<128x4xf32>
    %37 = vector.extract_strided_slice %7 {offsets = [0, 8], sizes = [128, 4], strides = [1, 1]} : vector<128x16xf32> to vector<128x4xf32>
    %cst_16 = arith.constant dense<0xFF800000> : vector<128xf32>
    %38 = vector.multi_reduction <maximumf>, %37, %cst_16 [1] : vector<128x4xf32> to vector<128xf32>
    %39 = vector.shape_cast %38 : vector<128xf32> to vector<128x1xf32>
    %40 = vector.broadcast %39 : vector<128x1xf32> to vector<128x4xf32>
    %41 = arith.subf %37, %40 : vector<128x4xf32>
    %42 = math.exp %41 : vector<128x4xf32>
    %cst_17 = arith.constant dense<0.000000e+00> : vector<128xf32>
    %43 = vector.multi_reduction <add>, %42, %cst_17 [1] : vector<128x4xf32> to vector<128xf32>
    %44 = vector.shape_cast %43 : vector<128xf32> to vector<128x1xf32>
    %45 = tpu.reciprocal %44 {approx = true} : vector<128x1xf32> -> vector<128x1xf32>
    %46 = vector.broadcast %45 : vector<128x1xf32> to vector<128x4xf32>
    %47 = arith.mulf %42, %46 : vector<128x4xf32>
    %48 = vector.extract_strided_slice %7 {offsets = [0, 12], sizes = [128, 4], strides = [1, 1]} : vector<128x16xf32> to vector<128x4xf32>
    %cst_18 = arith.constant dense<0xFF800000> : vector<128xf32>
    %49 = vector.multi_reduction <maximumf>, %48, %cst_18 [1] : vector<128x4xf32> to vector<128xf32>
    %50 = vector.shape_cast %49 : vector<128xf32> to vector<128x1xf32>
    %51 = vector.broadcast %50 : vector<128x1xf32> to vector<128x4xf32>
    %52 = arith.subf %48, %51 : vector<128x4xf32>
    %53 = math.exp %52 : vector<128x4xf32>
    %cst_19 = arith.constant dense<0.000000e+00> : vector<128xf32>
    %54 = vector.multi_reduction <add>, %53, %cst_19 [1] : vector<128x4xf32> to vector<128xf32>
    %55 = vector.shape_cast %54 : vector<128xf32> to vector<128x1xf32>
    %56 = tpu.reciprocal %55 {approx = true} : vector<128x1xf32> -> vector<128x1xf32>
    %57 = vector.broadcast %56 : vector<128x1xf32> to vector<128x4xf32>
    %58 = arith.mulf %53, %57 : vector<128x4xf32>
    %59 = tpu.concatenate %14, %25, %36, %47, %58 in 1 : vector<128x32xf32>, vector<128x4xf32>, vector<128x4xf32>, vector<128x4xf32>, vector<128x4xf32> -> vector<128x48xf32>
    %c0_20 = arith.constant 0 : index
    %c0_21 = arith.constant 0 : index
    %60 = vector.load %arg7[%c0_20, %c0_21] : memref<128x48xf32, #tpu.memory_space<vmem>>, vector<128x48xf32>
    tpu.vector_store %arg7[%c0_20, %c0_21], %59 {strides = array<i32>} : memref<128x48xf32, #tpu.memory_space<vmem>>, vector<128x48xf32>,
    return
  }
  func.func @transform_0(%arg0: i32) -> (i32, i32) {
    %c0_i32 = arith.constant 0 : i32
    %c0_i32_0 = arith.constant 0 : i32
    return %arg0, %c0_i32 : i32, i32
  }
  func.func @transform_1(%arg0: i32) -> (i32, i32) {
    %c0_i32 = arith.constant 0 : i32
    %c0_i32_0 = arith.constant 0 : i32
    return %arg0, %c0_i32 : i32, i32
  }
  func.func @transform_2(%arg0: i32) -> (i32, i32) {
    %c0_i32 = arith.constant 0 : i32
    %c0_i32_0 = arith.constant 0 : i32
    %c0_i32_1 = arith.constant 0 : i32
    return %c0_i32, %c0_i32_0 : i32, i32
  }
  func.func @transform_3(%arg0: i32) -> (i32, i32) {
    %c0_i32 = arith.constant 0 : i32
    %c0_i32_0 = arith.constant 0 : i32
    %c0_i32_1 = arith.constant 0 : i32
    return %c0_i32, %c0_i32_0 : i32, i32
  }
  func.func @transform_4(%arg0: i32) -> (i32, i32) {
    %c0_i32 = arith.constant 0 : i32
    %c0_i32_0 = arith.constant 0 : i32
    %c0_i32_1 = arith.constant 0 : i32
    return %c0_i32, %c0_i32_0 : i32, i32
  }
  func.func @transform_5(%arg0: i32) -> (i32, i32) {
    %c0_i32 = arith.constant 0 : i32
    %c0_i32_0 = arith.constant 0 : i32
    %c0_i32_1 = arith.constant 0 : i32
    return %c0_i32, %c0_i32_0 : i32, i32
  }
  func.func @transform_6(%arg0: i32) -> (i32, i32) {
    %c0_i32 = arith.constant 0 : i32
    %c0_i32_0 = arith.constant 0 : i32
    return %arg0, %c0_i32 : i32, i32
  }
}

</mosaic_0001>

<llo_original>
// kernel: tpu_custom_call.1
$region0: #{tpu_custom_call.1}
  #allocation0 [shape = 'u32[]', space=smem, size = 0x4, offset = 0x4, fixed_abs, tag = 'smem constant byte address 0x4 - core index']
  #allocation1 [shape = 'u32[144,128]{1,0:T(1,128)}', space=vmem, size = 0x12000, scoped, tag = 'internal scratch']
  %s0 = inlined_call_operand.vmem [shape: f32[128,32], index: 0, kind: input, shape index: {}]
  %s1 = inlined_call_operand.vmem [shape: f32[128,4], index: 1, kind: input, shape index: {}]
  %s2 = inlined_call_operand.vmem [shape: f32[32,48], index: 2, kind: input, shape index: {}]
  %s3 = inlined_call_operand.vmem [shape: f32[1,48], index: 3, kind: input, shape index: {}]
  %s4 = inlined_call_operand.vmem [shape: f32[4,32], index: 4, kind: input, shape index: {}]
  %s5 = inlined_call_operand.vmem [shape: f32[1,32], index: 5, kind: input, shape index: {}]
  %s6 = inlined_call_operand.vmem [shape: f32[128,48], index: 6, kind: output, shape index: {}]
  %s7 = sld [smem:[#allocation0]]
  $region34: #{tpu_custom_call.1} parent=0
    _
  %s9 = ssub.s32 1, %s7
  %s10 = scalar_select 0, %s9, %s7
  // Predicated region
  $region2: #{tpu_custom_call.1} parent=0 // pred_check
    _
  $region3: #{tpu_custom_call.1} parent=0 // pred_check_branch
    %12 = sbr.rel (0) target = $region5
  $region4: #{tpu_custom_call.1} parent=0 // pred_region
    _
  $region5: #{tpu_custom_call.1} parent=0 // pred_fallthru
    _
  // Predicated region
  $region6: #{tpu_custom_call.1} parent=0 // pred_check
    _
  $region7: #{tpu_custom_call.1} parent=0 // pred_check_branch
    %14 = sbr.rel (0) target = $region9
  $region8: #{tpu_custom_call.1} parent=0 // pred_region
    _
  $region9: #{tpu_custom_call.1} parent=0 // pred_fallthru
    _
  // Predicated region
  $region10: #{tpu_custom_call.1} parent=0 // pred_check
    _
  $region11: #{tpu_custom_call.1} parent=0 // pred_check_branch
    %16 = sbr.rel (0) target = $region13
  $region12: #{tpu_custom_call.1} parent=0 // pred_region
    _
  $region13: #{tpu_custom_call.1} parent=0 // pred_fallthru
    _
  // Predicated region
  $region14: #{tpu_custom_call.1} parent=0 // pred_check
    _
  $region15: #{tpu_custom_call.1} parent=0 // pred_check_branch
    %18 = sbr.rel (0) target = $region17
  $region16: #{tpu_custom_call.1} parent=0 // pred_region
    _
  $region17: #{tpu_custom_call.1} parent=0 // pred_fallthru
    _
  // Predicated region
  $region18: #{tpu_custom_call.1} parent=0 // pred_check
    _
  $region19: #{tpu_custom_call.1} parent=0 // pred_check_branch
    %20 = sbr.rel (0) target = $region21
  $region20: #{tpu_custom_call.1} parent=0 // pred_region
    _
  $region21: #{tpu_custom_call.1} parent=0 // pred_fallthru
    _
  // Predicated region
  $region22: #{tpu_custom_call.1} parent=0 // pred_check
    _
  $region23: #{tpu_custom_call.1} parent=0 // pred_check_branch
    %22 = sbr.rel (0) target = $region25
  $region24: #{tpu_custom_call.1} parent=0 // pred_region
    _
  $region25: #{tpu_custom_call.1} parent=0 // pred_fallthru
    _
  %v23 = vld [vmem:[%s0] sm:$0xff]
  %v24 = vld [vmem:[%s0 + $0x8] sm:$0xff]
  %v25 = vld [vmem:[%s0 + $0x10] sm:$0xff]
  %v26 = vld [vmem:[%s0 + $0x18] sm:$0xff]
  %v27 = vld [vmem:[%s0 + $0x20] sm:$0xff]
  %v28 = vld [vmem:[%s0 + $0x28] sm:$0xff]
  %v29 = vld [vmem:[%s0 + $0x30] sm:$0xff]
  %v30 = vld [vmem:[%s0 + $0x38] sm:$0xff]
  %v31 = vld [vmem:[%s0 + $0x40] sm:$0xff]
  %v32 = vld [vmem:[%s0 + $0x48] sm:$0xff]
  %v33 = vld [vmem:[%s0 + $0x50] sm:$0xff]
  %v34 = vld [vmem:[%s0 + $0x58] sm:$0xff]
  %v35 = vld [vmem:[%s0 + $0x60] sm:$0xff]
  %v36 = vld [vmem:[%s0 + $0x68] sm:$0xff]
  %v37 = vld [vmem:[%s0 + $0x70] sm:$0xff]
  %v38 = vld [vmem:[%s0 + $0x78] sm:$0xff]
  %v39 = vld [vmem:[%s2] sm:$0xff]
  %v40 = vld [vmem:[%s2 + $0x8] sm:$0xff]
  %v41 = vld [vmem:[%s2 + $0x10] sm:$0xff]
  %v42 = vld [vmem:[%s2 + $0x18] sm:$0xff]
  %v43 = vld [vmem:[%s3] sm:$0x1]
  %v45 = vlaneseq
  %v46 = vshrl.u32 %v45, 7
  %v47 = vsub.s32 0, %v46
  %v48 = vrot.slane %v43, %v47
  %vm50 = vcmask 261120
  %v52 = vsel %vm50, %v23, 0
  %v55 = vsel %vm50, %v24, 0
  %v58 = vsel %vm50, %v25, 0
  %v61 = vsel %vm50, %v26, 0
  %v64 = vsel %vm50, %v27, 0
  %v67 = vsel %vm50, %v28, 0
  %v70 = vsel %vm50, %v29, 0
  %v73 = vsel %vm50, %v30, 0
  %v76 = vsel %vm50, %v31, 0
  %v79 = vsel %vm50, %v32, 0
  %v82 = vsel %vm50, %v33, 0
  %v85 = vsel %vm50, %v34, 0
  %v88 = vsel %vm50, %v35, 0
  %v91 = vsel %vm50, %v36, 0
  %v94 = vsel %vm50, %v37, 0
  %v97 = vsel %vm50, %v38, 0
  %99 = vmatprep.subr.mxu0 0.0
  %100 = vmatpush1.msra.mxu0 %v39
  %101 = vmatprep.subr.mxu0 0.0
  %102 = vmatpush1.msra.mxu0 %v40
  %103 = vmatprep.subr.mxu0 0.0
  %104 = vmatpush1.msra.mxu0 %v41
  %105 = vmatprep.subr.mxu0 0.0
  %106 = vmatpush1.msra.mxu0 %v42
  %107 = vmatprep.subr.mxu0 0.0
  %108 = vmatpush1.msra.mxu0 0.0
  %109 = vmatprep.subr.mxu0 0.0
  %110 = vmatpush1.msra.mxu0 0.0
  %111 = vmatprep.subr.mxu0 0.0
  %112 = vmatpush1.msra.mxu0 0.0
  %113 = vmatprep.subr.mxu0 0.0
  %114 = vmatpush1.msra.mxu0 0.0
  %115 = vmatprep.subr.mxu0 0.0
  %116 = vmatpush1.msra.mxu0 0.0
  %117 = vmatprep.subr.mxu0 0.0
  %118 = vmatpush1.msra.mxu0 0.0
  %119 = vmatprep.subr.mxu0 0.0
  %120 = vmatpush1.msra.mxu0 0.0
  %121 = vmatprep.subr.mxu0 0.0
  %122 = vmatpush1.msra.mxu0 0.0
  %123 = vmatprep.subr.mxu0 0.0
  %124 = vmatpush1.msra.mxu0 0.0
  %125 = vmatprep.subr.mxu0 0.0
  %126 = vmatpush1.msra.mxu0 0.0
  %127 = vmatprep.subr.mxu0 0.0
  %128 = vmatpush1.msra.mxu0 0.0
  %129 = vmatprep.subr.mxu0 0.0
  %130 = vmatpush1.msra.mxu0 0.0
  %131 = vmatprep.subr.mxu0 0.0
  %132 = vmatpush1.msra.mxu0 0.0
  %133 = vmatprep.subr.mxu0 0.0
  %134 = vmatpush1.msra.mxu0 0.0
  %135 = vmatprep.subr.mxu0 0.0
  %136 = vmatpush1.msra.mxu0 0.0
  %137 = vmatprep.subr.mxu0 0.0
  %138 = vmatpush1.msra.mxu0 0.0
  %139 = vmatprep.subr.mxu0 0.0
  %140 = vmatpush1.msra.mxu0 0.0
  %141 = vmatprep.subr.mxu0 0.0
  %142 = vmatpush1.msra.mxu0 0.0
  %143 = vmatprep.subr.mxu0 0.0
  %144 = vmatpush1.msra.mxu0 0.0
  %145 = vmatprep.subr.mxu0 0.0
  %146 = vmatpush1.msra.mxu0 0.0
  %147 = vmatprep.subr.mxu0 0.0
  %148 = vmatpush1.msra.mxu0 0.0
  %149 = vmatprep.subr.mxu0 0.0
  %150 = vmatpush1.msra.mxu0 0.0
  %151 = vmatprep.subr.mxu0 0.0
  %152 = vmatpush1.msra.mxu0 0.0
  %153 = vmatprep.subr.mxu0 0.0
  %154 = vmatpush1.msra.mxu0 0.0
  %155 = vmatprep.subr.mxu0 0.0
  %156 = vmatpush1.msra.mxu0 0.0
  %157 = vmatprep.subr.mxu0 0.0
  %158 = vmatpush1.msra.mxu0 0.0
  %159 = vmatprep.subr.mxu0 0.0
  %160 = vmatpush1.msra.mxu0 0.0
  %161 = vmatprep.subr.mxu0 0.0
  %162 = vmatpush1.msra.mxu0 0.0
  %163 = vmatprep.mubr.f32.mxu0 0.0
  %164 = vmatmul.mubr.f32.gmra.mrb[0].mxu0 %v52
  %v165 = vpop.f32.mrb[0].mxu0
  %v166 = vadd.f32 %v48, %v165
  %v167 = vpop.f32.mrb[0].mxu0
  %168 = vmatprep.mubr.f32.mxu0 0.0
  %169 = vmatmul.mubr.f32.gmra.mrb[0].mxu0 %v55
  %v170 = vpop.f32.mrb[0].mxu0
  %v171 = vadd.f32 %v48, %v170
  %v172 = vpop.f32.mrb[0].mxu0
  %173 = vmatprep.mubr.f32.mxu0 0.0
  %174 = vmatmul.mubr.f32.gmra.mrb[0].mxu0 %v58
  %v175 = vpop.f32.mrb[0].mxu0
  %v176 = vadd.f32 %v48, %v175
  %v177 = vpop.f32.mrb[0].mxu0
  %178 = vmatprep.mubr.f32.mxu0 0.0
  %179 = vmatmul.mubr.f32.gmra.mrb[0].mxu0 %v61
  %v180 = vpop.f32.mrb[0].mxu0
  %v181 = vadd.f32 %v48, %v180
  %v182 = vpop.f32.mrb[0].mxu0
  %183 = vmatprep.mubr.f32.mxu0 0.0
  %184 = vmatmul.mubr.f32.gmra.mrb[0].mxu0 %v64
  %v185 = vpop.f32.mrb[0].mxu0
  %v186 = vadd.f32 %v48, %v185
  %v187 = vpop.f32.mrb[0].mxu0
  %188 = vmatprep.mubr.f32.mxu0 0.0
  %189 = vmatmul.mubr.f32.gmra.mrb[0].mxu0 %v67
  %v190 = vpop.f32.mrb[0].mxu0
  %v191 = vadd.f32 %v48, %v190
  %v192 = vpop.f32.mrb[0].mxu0
  %193 = vmatprep.mubr.f32.mxu0 0.0
  %194 = vmatmul.mubr.f32.gmra.mrb[0].mxu0 %v70
  %v195 = vpop.f32.mrb[0].mxu0
  %v196 = vadd.f32 %v48, %v195
  %v197 = vpop.f32.mrb[0].mxu0
  %198 = vmatprep.mubr.f32.mxu0 0.0
  %199 = vmatmul.mubr.f32.gmra.mrb[0].mxu0 %v73
  %v200 = vpop.f32.mrb[0].mxu0
  %v201 = vadd.f32 %v48, %v200
  %v202 = vpop.f32.mrb[0].mxu0
  %203 = vmatprep.mubr.f32.mxu0 0.0
  %204 = vmatmul.mubr.f32.gmra.mrb[0].mxu0 %v76
  %v205 = vpop.f32.mrb[0].mxu0
  %v206 = vadd.f32 %v48, %v205
  %v207 = vpop.f32.mrb[0].mxu0
  %208 = vmatprep.mubr.f32.mxu0 0.0
  %209 = vmatmul.mubr.f32.gmra.mrb[0].mxu0 %v79
  %v210 = vpop.f32.mrb[0].mxu0
  %v211 = vadd.f32 %v48, %v210
  %v212 = vpop.f32.mrb[0].mxu0
  %213 = vmatprep.mubr.f32.mxu0 0.0
  %214 = vmatmul.mubr.f32.gmra.mrb[0].mxu0 %v82
  %v215 = vpop.f32.mrb[0].mxu0
  %v216 = vadd.f32 %v48, %v215
  %v217 = vpop.f32.mrb[0].mxu0
  %218 = vmatprep.mubr.f32.mxu0 0.0
  %219 = vmatmul.mubr.f32.gmra.mrb[0].mxu0 %v85
  %v220 = vpop.f32.mrb[0].mxu0
  %v221 = vadd.f32 %v48, %v220
  %v222 = vpop.f32.mrb[0].mxu0
  %223 = vmatprep.mubr.f32.mxu0 0.0
  %224 = vmatmul.mubr.f32.gmra.mrb[0].mxu0 %v88
  %v225 = vpop.f32.mrb[0].mxu0
  %v226 = vadd.f32 %v48, %v225
  %v227 = vpop.f32.mrb[0].mxu0
  %228 = vmatprep.mubr.f32.mxu0 0.0
  %229 = vmatmul.mubr.f32.gmra.mrb[0].mxu0 %v91
  %v230 = vpop.f32.mrb[0].mxu0
  %v231 = vadd.f32 %v48, %v230
  %v232 = vpop.f32.mrb[0].mxu0
  %233 = vmatprep.mubr.f32.mxu0 0.0
  %234 = vmatmul.mubr.f32.gmra.mrb[0].mxu0 %v94
  %v235 = vpop.f32.mrb[0].mxu0
  %v236 = vadd.f32 %v48, %v235
  %v237 = vpop.f32.mrb[0].mxu0
  %238 = vmatprep.mubr.f32.mxu0 0.0
  %239 = vmatmul.mubr.f32.gmra.mrb[0].mxu0 %v97
  %v240 = vpop.f32.mrb[0].mxu0
  %v241 = vadd.f32 %v48, %v240
  %v242 = vpop.f32.mrb[0].mxu0
  %243 = vdwg.mxu0
  %v244 = vld [vmem:[%s1] sm:$0xff]
  %v245 = vld [vmem:[%s1 + $0x8] sm:$0xff]
  %v246 = vld [vmem:[%s1 + $0x10] sm:$0xff]
  %v247 = vld [vmem:[%s1 + $0x18] sm:$0xff]
  %v248 = vld [vmem:[%s1 + $0x20] sm:$0xff]
  %v249 = vld [vmem:[%s1 + $0x28] sm:$0xff]
  %v250 = vld [vmem:[%s1 + $0x30] sm:$0xff]
  %v251 = vld [vmem:[%s1 + $0x38] sm:$0xff]
  %v252 = vld [vmem:[%s1 + $0x40] sm:$0xff]
  %v253 = vld [vmem:[%s1 + $0x48] sm:$0xff]
  %v254 = vld [vmem:[%s1 + $0x50] sm:$0xff]
  %v255 = vld [vmem:[%s1 + $0x58] sm:$0xff]
  %v256 = vld [vmem:[%s1 + $0x60] sm:$0xff]
  %v257 = vld [vmem:[%s1 + $0x68] sm:$0xff]
  %v258 = vld [vmem:[%s1 + $0x70] sm:$0xff]
  %v259 = vld [vmem:[%s1 + $0x78] sm:$0xff]
  %v260 = vld [vmem:[%s4] sm:$0xf]
  %v261 = vld [vmem:[%s5] sm:$0x1]
  %v263 = vlaneseq
  %v264 = vshrl.u32 %v263, 7
  %v265 = vsub.s32 0, %v264
  %v266 = vrot.slane %v261, %v265
  %v268 = vmul.f32 %v166, %v266
  %v269 = vmul.f32 %v171, %v266
  %v270 = vmul.f32 %v176, %v266
  %v271 = vmul.f32 %v181, %v266
  %v272 = vmul.f32 %v186, %v266
  %v273 = vmul.f32 %v191, %v266
  %v274 = vmul.f32 %v196, %v266
  %v275 = vmul.f32 %v201, %v266
  %v276 = vmul.f32 %v206, %v266
  %v277 = vmul.f32 %v211, %v266
  %v278 = vmul.f32 %v216, %v266
  %v279 = vmul.f32 %v221, %v266
  %v280 = vmul.f32 %v226, %v266
  %v281 = vmul.f32 %v231, %v266
  %v282 = vmul.f32 %v236, %v266
  %v283 = vmul.f32 %v241, %v266
  %vm284 = vcmask 31744
  %v286 = vsel %vm284, %v244, 0
  %v289 = vsel %vm284, %v245, 0
  %v292 = vsel %vm284, %v246, 0
  %v295 = vsel %vm284, %v247, 0
  %v298 = vsel %vm284, %v248, 0
  %v301 = vsel %vm284, %v249, 0
  %v304 = vsel %vm284, %v250, 0
  %v307 = vsel %vm284, %v251, 0
  %v310 = vsel %vm284, %v252, 0
  %v313 = vsel %vm284, %v253, 0
  %v316 = vsel %vm284, %v254, 0
  %v319 = vsel %vm284, %v255, 0
  %v322 = vsel %vm284, %v256, 0
  %v325 = vsel %vm284, %v257, 0
  %v328 = vsel %vm284, %v258, 0
  %v331 = vsel %vm284, %v259, 0
  %vm333 = vcmask 1043456
  %v335 = vsel %vm333, %v260, 0
  %337 = vmatprep.subr.mxu0 0.0
  %338 = vmatpush1.msra.mxu0 %v335
  %339 = vmatprep.subr.mxu0 0.0
  %340 = vmatpush1.msra.mxu0 0.0
  %341 = vmatprep.subr.mxu0 0.0
  %342 = vmatpush1.msra.mxu0 0.0
  %343 = vmatprep.subr.mxu0 0.0
  %344 = vmatpush1.msra.mxu0 0.0
  %345 = vmatprep.subr.mxu0 0.0
  %346 = vmatpush1.msra.mxu0 0.0
  %347 = vmatprep.subr.mxu0 0.0
  %348 = vmatpush1.msra.mxu0 0.0
  %349 = vmatprep.subr.mxu0 0.0
  %350 = vmatpush1.msra.mxu0 0.0
  %351 = vmatprep.subr.mxu0 0.0
  %352 = vmatpush1.msra.mxu0 0.0
  %353 = vmatprep.subr.mxu0 0.0
  %354 = vmatpush1.msra.mxu0 0.0
  %355 = vmatprep.subr.mxu0 0.0
  %356 = vmatpush1.msra.mxu0 0.0
  %357 = vmatprep.subr.mxu0 0.0
  %358 = vmatpush1.msra.mxu0 0.0
  %359 = vmatprep.subr.mxu0 0.0
  %360 = vmatpush1.msra.mxu0 0.0
  %361 = vmatprep.subr.mxu0 0.0
  %362 = vmatpush1.msra.mxu0 0.0
  %363 = vmatprep.subr.mxu0 0.0
  %364 = vmatpush1.msra.mxu0 0.0
  %365 = vmatprep.subr.mxu0 0.0
  %366 = vmatpush1.msra.mxu0 0.0
  %367 = vmatprep.subr.mxu0 0.0
  %368 = vmatpush1.msra.mxu0 0.0
  %369 = vmatprep.subr.mxu0 0.0
  %370 = vmatpush1.msra.mxu0 0.0
  %371 = vmatprep.subr.mxu0 0.0
  %372 = vmatpush1.msra.mxu0 0.0
  %373 = vmatprep.subr.mxu0 0.0
  %374 = vmatpush1.msra.mxu0 0.0
  %375 = vmatprep.subr.mxu0 0.0
  %376 = vmatpush1.msra.mxu0 0.0
  %377 = vmatprep.subr.mxu0 0.0
  %378 = vmatpush1.msra.mxu0 0.0
  %379 = vmatprep.subr.mxu0 0.0
  %380 = vmatpush1.msra.mxu0 0.0
  %381 = vmatprep.subr.mxu0 0.0
  %382 = vmatpush1.msra.mxu0 0.0
  %383 = vmatprep.subr.mxu0 0.0
  %384 = vmatpush1.msra.mxu0 0.0
  %385 = vmatprep.subr.mxu0 0.0
  %386 = vmatpush1.msra.mxu0 0.0
  %387 = vmatprep.subr.mxu0 0.0
  %388 = vmatpush1.msra.mxu0 0.0
  %389 = vmatprep.subr.mxu0 0.0
  %390 = vmatpush1.msra.mxu0 0.0
  %391 = vmatprep.subr.mxu0 0.0
  %392 = vmatpush1.msra.mxu0 0.0
  %393 = vmatprep.subr.mxu0 0.0
  %394 = vmatpush1.msra.mxu0 0.0
  %395 = vmatprep.subr.mxu0 0.0
  %396 = vmatpush1.msra.mxu0 0.0
  %397 = vmatprep.subr.mxu0 0.0
  %398 = vmatpush1.msra.mxu0 0.0
  %399 = vmatprep.subr.mxu0 0.0
  %400 = vmatpush1.msra.mxu0 0.0
  %401 = vmatprep.mubr.f32.mxu0 0.0
  %402 = vmatmul.mubr.f32.gmra.mrb[0].mxu0 %v286
  %v403 = vpop.f32.mrb[0].mxu0
  %v404 = vadd.f32 %v268, %v403
  %v405 = vpop.f32.mrb[0].mxu0
  %406 = vmatprep.mubr.f32.mxu0 0.0
  %407 = vmatmul.mubr.f32.gmra.mrb[0].mxu0 %v289
  %v408 = vpop.f32.mrb[0].mxu0
  %v409 = vadd.f32 %v269, %v408
  %v410 = vpop.f32.mrb[0].mxu0
  %411 = vmatprep.mubr.f32.mxu0 0.0
  %412 = vmatmul.mubr.f32.gmra.mrb[0].mxu0 %v292
  %v413 = vpop.f32.mrb[0].mxu0
  %v414 = vadd.f32 %v270, %v413
  %v415 = vpop.f32.mrb[0].mxu0
  %416 = vmatprep.mubr.f32.mxu0 0.0
  %417 = vmatmul.mubr.f32.gmra.mrb[0].mxu0 %v295
  %v418 = vpop.f32.mrb[0].mxu0
  %v419 = vadd.f32 %v271, %v418
  %v420 = vpop.f32.mrb[0].mxu0
  %421 = vmatprep.mubr.f32.mxu0 0.0
  %422 = vmatmul.mubr.f32.gmra.mrb[0].mxu0 %v298
  %v423 = vpop.f32.mrb[0].mxu0
  %v424 = vadd.f32 %v272, %v423
  %v425 = vpop.f32.mrb[0].mxu0
  %426 = vmatprep.mubr.f32.mxu0 0.0
  %427 = vmatmul.mubr.f32.gmra.mrb[0].mxu0 %v301
  %v428 = vpop.f32.mrb[0].mxu0
  %v429 = vadd.f32 %v273, %v428
  %v430 = vpop.f32.mrb[0].mxu0
  %431 = vmatprep.mubr.f32.mxu0 0.0
  %432 = vmatmul.mubr.f32.gmra.mrb[0].mxu0 %v304
  %v433 = vpop.f32.mrb[0].mxu0
  %v434 = vadd.f32 %v274, %v433
  %v435 = vpop.f32.mrb[0].mxu0
  %436 = vmatprep.mubr.f32.mxu0 0.0
  %437 = vmatmul.mubr.f32.gmra.mrb[0].mxu0 %v307
  %v438 = vpop.f32.mrb[0].mxu0
  %v439 = vadd.f32 %v275, %v438
  %v440 = vpop.f32.mrb[0].mxu0
  %441 = vmatprep.mubr.f32.mxu0 0.0
  %442 = vmatmul.mubr.f32.gmra.mrb[0].mxu0 %v310
  %v443 = vpop.f32.mrb[0].mxu0
  %v444 = vadd.f32 %v276, %v443
  %v445 = vpop.f32.mrb[0].mxu0
  %446 = vmatprep.mubr.f32.mxu0 0.0
  %447 = vmatmul.mubr.f32.gmra.mrb[0].mxu0 %v313
  %v448 = vpop.f32.mrb[0].mxu0
  %v449 = vadd.f32 %v277, %v448
  %v450 = vpop.f32.mrb[0].mxu0
  %451 = vmatprep.mubr.f32.mxu0 0.0
  %452 = vmatmul.mubr.f32.gmra.mrb[0].mxu0 %v316
  %v453 = vpop.f32.mrb[0].mxu0
  %v454 = vadd.f32 %v278, %v453
  %v455 = vpop.f32.mrb[0].mxu0
  %456 = vmatprep.mubr.f32.mxu0 0.0
  %457 = vmatmul.mubr.f32.gmra.mrb[0].mxu0 %v319
  %v458 = vpop.f32.mrb[0].mxu0
  %v459 = vadd.f32 %v279, %v458
  %v460 = vpop.f32.mrb[0].mxu0
  %461 = vmatprep.mubr.f32.mxu0 0.0
  %462 = vmatmul.mubr.f32.gmra.mrb[0].mxu0 %v322
  %v463 = vpop.f32.mrb[0].mxu0
  %v464 = vadd.f32 %v280, %v463
  %v465 = vpop.f32.mrb[0].mxu0
  %466 = vmatprep.mubr.f32.mxu0 0.0
  %467 = vmatmul.mubr.f32.gmra.mrb[0].mxu0 %v325
  %v468 = vpop.f32.mrb[0].mxu0
  %v469 = vadd.f32 %v281, %v468
  %v470 = vpop.f32.mrb[0].mxu0
  %471 = vmatprep.mubr.f32.mxu0 0.0
  %472 = vmatmul.mubr.f32.gmra.mrb[0].mxu0 %v328
  %v473 = vpop.f32.mrb[0].mxu0
  %v474 = vadd.f32 %v282, %v473
  %v475 = vpop.f32.mrb[0].mxu0
  %476 = vmatprep.mubr.f32.mxu0 0.0
  %477 = vmatmul.mubr.f32.gmra.mrb[0].mxu0 %v331
  %v478 = vpop.f32.mrb[0].mxu0
  %v479 = vadd.f32 %v283, %v478
  %v480 = vpop.f32.mrb[0].mxu0
  %481 = vdwg.mxu0
  %vm482 = vcmask 294144
  %v483 = vsel %vm482, %v166, -inf
  %484 = vmax.xlane.f32.xlu0 %v483
  %v485 = vpop.xlane.xlu0 %484
  %v486 = vsel %vm482, %v171, -inf
  %487 = vmax.xlane.f32.xlu0 %v486
  %v488 = vpop.xlane.xlu0 %487
  %v489 = vsel %vm482, %v176, -inf
  %490 = vmax.xlane.f32.xlu0 %v489
  %v491 = vpop.xlane.xlu0 %490
  %v492 = vsel %vm482, %v181, -inf
  %493 = vmax.xlane.f32.xlu0 %v492
  %v494 = vpop.xlane.xlu0 %493
  %v495 = vsel %vm482, %v186, -inf
  %496 = vmax.xlane.f32.xlu0 %v495
  %v497 = vpop.xlane.xlu0 %496
  %v498 = vsel %vm482, %v191, -inf
  %499 = vmax.xlane.f32.xlu0 %v498
  %v500 = vpop.xlane.xlu0 %499
  %v501 = vsel %vm482, %v196, -inf
  %502 = vmax.xlane.f32.xlu0 %v501
  %v503 = vpop.xlane.xlu0 %502
  %v504 = vsel %vm482, %v201, -inf
  %505 = vmax.xlane.f32.xlu0 %v504
  %v506 = vpop.xlane.xlu0 %505
  %v507 = vsel %vm482, %v206, -inf
  %508 = vmax.xlane.f32.xlu0 %v507
  %v509 = vpop.xlane.xlu0 %508
  %v510 = vsel %vm482, %v211, -inf
  %511 = vmax.xlane.f32.xlu0 %v510
  %v512 = vpop.xlane.xlu0 %511
  %v513 = vsel %vm482, %v216, -inf
  %514 = vmax.xlane.f32.xlu0 %v513
  %v515 = vpop.xlane.xlu0 %514
  %v516 = vsel %vm482, %v221, -inf
  %517 = vmax.xlane.f32.xlu0 %v516
  %v518 = vpop.xlane.xlu0 %517
  %v519 = vsel %vm482, %v226, -inf
  %520 = vmax.xlane.f32.xlu0 %v519
  %v521 = vpop.xlane.xlu0 %520
  %v522 = vsel %vm482, %v231, -inf
  %523 = vmax.xlane.f32.xlu0 %v522
  %v524 = vpop.xlane.xlu0 %523
  %v525 = vsel %vm482, %v236, -inf
  %526 = vmax.xlane.f32.xlu0 %v525
  %v527 = vpop.xlane.xlu0 %526
  %v528 = vsel %vm482, %v241, -inf
  %529 = vmax.xlane.f32.xlu0 %v528
  %v530 = vpop.xlane.xlu0 %529
  %v531 = vsub.f32 %v166, %v485
  %v532 = vsub.f32 %v171, %v488
  %v533 = vsub.f32 %v176, %v491
  %v534 = vsub.f32 %v181, %v494
  %v535 = vsub.f32 %v186, %v497
  %v536 = vsub.f32 %v191, %v500
  %v537 = vsub.f32 %v196, %v503
  %v538 = vsub.f32 %v201, %v506
  %v539 = vsub.f32 %v206, %v509
  %v540 = vsub.f32 %v211, %v512
  %v541 = vsub.f32 %v216, %v515
  %v542 = vsub.f32 %v221, %v518
  %v543 = vsub.f32 %v226, %v521
  %v544 = vsub.f32 %v231, %v524
  %v545 = vsub.f32 %v236, %v527
  %v546 = vsub.f32 %v241, %v530
  %v547 = vmul.f32 %v531, 1.442695
  %v548 = vpow.pop %v547
  %v549 = vmul.f32 %v532, 1.442695
  %v550 = vpow.pop %v549
  %v551 = vmul.f32 %v533, 1.442695
  %v552 = vpow.pop %v551
  %v553 = vmul.f32 %v534, 1.442695
  %v554 = vpow.pop %v553
  %v555 = vmul.f32 %v535, 1.442695
  %v556 = vpow.pop %v555
  %v557 = vmul.f32 %v536, 1.442695
  %v558 = vpow.pop %v557
  %v559 = vmul.f32 %v537, 1.442695
  %v560 = vpow.pop %v559
  %v561 = vmul.f32 %v538, 1.442695
  %v562 = vpow.pop %v561
  %v563 = vmul.f32 %v539, 1.442695
  %v564 = vpow.pop %v563
  %v565 = vmul.f32 %v540, 1.442695
  %v566 = vpow.pop %v565
  %v567 = vmul.f32 %v541, 1.442695
  %v568 = vpow.pop %v567
  %v569 = vmul.f32 %v542, 1.442695
  %v570 = vpow.pop %v569
  %v571 = vmul.f32 %v543, 1.442695
  %v572 = vpow.pop %v571
  %v573 = vmul.f32 %v544, 1.442695
  %v574 = vpow.pop %v573
  %v575 = vmul.f32 %v545, 1.442695
  %v576 = vpow.pop %v575
  %v577 = vmul.f32 %v546, 1.442695
  %v578 = vpow.pop %v577
  %595 = vrot.lane.b32.xlu0 %v548, 96
  %v596 = vpop.permute.xlu0 %595
  %597 = vrot.lane.b32.xlu0 %v550, 96
  %v598 = vpop.permute.xlu0 %597
  %599 = vrot.lane.b32.xlu0 %v552, 96
  %v600 = vpop.permute.xlu0 %599
  %601 = vrot.lane.b32.xlu0 %v554, 96
  %v602 = vpop.permute.xlu0 %601
  %603 = vrot.lane.b32.xlu0 %v556, 96
  %v604 = vpop.permute.xlu0 %603
  %605 = vrot.lane.b32.xlu0 %v558, 96
  %v606 = vpop.permute.xlu0 %605
  %607 = vrot.lane.b32.xlu0 %v560, 96
  %v608 = vpop.permute.xlu0 %607
  %609 = vrot.lane.b32.xlu0 %v562, 96
  %v610 = vpop.permute.xlu0 %609
  %611 = vrot.lane.b32.xlu0 %v564, 96
  %v612 = vpop.permute.xlu0 %611
  %613 = vrot.lane.b32.xlu0 %v566, 96
  %v614 = vpop.permute.xlu0 %613
  %615 = vrot.lane.b32.xlu0 %v568, 96
  %v616 = vpop.permute.xlu0 %615
  %617 = vrot.lane.b32.xlu0 %v570, 96
  %v618 = vpop.permute.xlu0 %617
  %619 = vrot.lane.b32.xlu0 %v572, 96
  %v620 = vpop.permute.xlu0 %619
  %621 = vrot.lane.b32.xlu0 %v574, 96
  %v622 = vpop.permute.xlu0 %621
  %623 = vrot.lane.b32.xlu0 %v576, 96
  %v624 = vpop.permute.xlu0 %623
  %625 = vrot.lane.b32.xlu0 %v578, 96
  %v626 = vpop.permute.xlu0 %625
  %v643 = vsel %vm284, %v596, 0.0
  %644 = vadd.xlane.f32.xlu0 %v643
  %v645 = vpop.xlane.xlu0 %644
  %v646 = vsel %vm284, %v598, 0.0
  %647 = vadd.xlane.f32.xlu0 %v646
  %v648 = vpop.xlane.xlu0 %647
  %v649 = vsel %vm284, %v600, 0.0
  %650 = vadd.xlane.f32.xlu0 %v649
  %v651 = vpop.xlane.xlu0 %650
  %v652 = vsel %vm284, %v602, 0.0
  %653 = vadd.xlane.f32.xlu0 %v652
  %v654 = vpop.xlane.xlu0 %653
  %v655 = vsel %vm284, %v604, 0.0
  %656 = vadd.xlane.f32.xlu0 %v655
  %v657 = vpop.xlane.xlu0 %656
  %v658 = vsel %vm284, %v606, 0.0
  %659 = vadd.xlane.f32.xlu0 %v658
  %v660 = vpop.xlane.xlu0 %659
  %v661 = vsel %vm284, %v608, 0.0
  %662 = vadd.xlane.f32.xlu0 %v661
  %v663 = vpop.xlane.xlu0 %662
  %v664 = vsel %vm284, %v610, 0.0
  %665 = vadd.xlane.f32.xlu0 %v664
  %v666 = vpop.xlane.xlu0 %665
  %v667 = vsel %vm284, %v612, 0.0
  %668 = vadd.xlane.f32.xlu0 %v667
  %v669 = vpop.xlane.xlu0 %668
  %v670 = vsel %vm284, %v614, 0.0
  %671 = vadd.xlane.f32.xlu0 %v670
  %v672 = vpop.xlane.xlu0 %671
  %v673 = vsel %vm284, %v616, 0.0
  %674 = vadd.xlane.f32.xlu0 %v673
  %v675 = vpop.xlane.xlu0 %674
  %v676 = vsel %vm284, %v618, 0.0
  %677 = vadd.xlane.f32.xlu0 %v676
  %v678 = vpop.xlane.xlu0 %677
  %v679 = vsel %vm284, %v620, 0.0
  %680 = vadd.xlane.f32.xlu0 %v679
  %v681 = vpop.xlane.xlu0 %680
  %v682 = vsel %vm284, %v622, 0.0
  %683 = vadd.xlane.f32.xlu0 %v682
  %v684 = vpop.xlane.xlu0 %683
  %v685 = vsel %vm284, %v624, 0.0
  %686 = vadd.xlane.f32.xlu0 %v685
  %v687 = vpop.xlane.xlu0 %686
  %v688 = vsel %vm284, %v626, 0.0
  %689 = vadd.xlane.f32.xlu0 %v688
  %v690 = vpop.xlane.xlu0 %689
  %v691 = vrcp.pop %v645
  %v692 = vrcp.pop %v648
  %v693 = vrcp.pop %v651
  %v694 = vrcp.pop %v654
  %v695 = vrcp.pop %v657
  %v696 = vrcp.pop %v660
  %v697 = vrcp.pop %v663
  %v698 = vrcp.pop %v666
  %v699 = vrcp.pop %v669
  %v700 = vrcp.pop %v672
  %v701 = vrcp.pop %v675
  %v702 = vrcp.pop %v678
  %v703 = vrcp.pop %v681
  %v704 = vrcp.pop %v684
  %v705 = vrcp.pop %v687
  %v706 = vrcp.pop %v690
  %v707 = vmul.f32 %v548, %v691
  %v708 = vmul.f32 %v550, %v692
  %v709 = vmul.f32 %v552, %v693
  %v710 = vmul.f32 %v554, %v694
  %v711 = vmul.f32 %v556, %v695
  %v712 = vmul.f32 %v558, %v696
  %v713 = vmul.f32 %v560, %v697
  %v714 = vmul.f32 %v562, %v698
  %v715 = vmul.f32 %v564, %v699
  %v716 = vmul.f32 %v566, %v700
  %v717 = vmul.f32 %v568, %v701
  %v718 = vmul.f32 %v570, %v702
  %v719 = vmul.f32 %v572, %v703
  %v720 = vmul.f32 %v574, %v704
  %v721 = vmul.f32 %v576, %v705
  %v722 = vmul.f32 %v578, %v706
  %vm723 = vcmask 326944
  %v724 = vsel %vm723, %v166, -inf
  %725 = vmax.xlane.f32.xlu0 %v724
  %v726 = vpop.xlane.xlu0 %725
  %v727 = vsel %vm723, %v171, -inf
  %728 = vmax.xlane.f32.xlu0 %v727
  %v729 = vpop.xlane.xlu0 %728
  %v730 = vsel %vm723, %v176, -inf
  %731 = vmax.xlane.f32.xlu0 %v730
  %v732 = vpop.xlane.xlu0 %731
  %v733 = vsel %vm723, %v181, -inf
  %734 = vmax.xlane.f32.xlu0 %v733
  %v735 = vpop.xlane.xlu0 %734
  %v736 = vsel %vm723, %v186, -inf
  %737 = vmax.xlane.f32.xlu0 %v736
  %v738 = vpop.xlane.xlu0 %737
  %v739 = vsel %vm723, %v191, -inf
  %740 = vmax.xlane.f32.xlu0 %v739
  %v741 = vpop.xlane.xlu0 %740
  %v742 = vsel %vm723, %v196, -inf
  %743 = vmax.xlane.f32.xlu0 %v742
  %v744 = vpop.xlane.xlu0 %743
  %v745 = vsel %vm723, %v201, -inf
  %746 = vmax.xlane.f32.xlu0 %v745
  %v747 = vpop.xlane.xlu0 %746
  %v748 = vsel %vm723, %v206, -inf
  %749 = vmax.xlane.f32.xlu0 %v748
  %v750 = vpop.xlane.xlu0 %749
  %v751 = vsel %vm723, %v211, -inf
  %752 = vmax.xlane.f32.xlu0 %v751
  %v753 = vpop.xlane.xlu0 %752
  %v754 = vsel %vm723, %v216, -inf
  %755 = vmax.xlane.f32.xlu0 %v754
  %v756 = vpop.xlane.xlu0 %755
  %v757 = vsel %vm723, %v221, -inf
  %758 = vmax.xlane.f32.xlu0 %v757
  %v759 = vpop.xlane.xlu0 %758
  %v760 = vsel %vm723, %v226, -inf
  %761 = vmax.xlane.f32.xlu0 %v760
  %v762 = vpop.xlane.xlu0 %761
  %v763 = vsel %vm723, %v231, -inf
  %764 = vmax.xlane.f32.xlu0 %v763
  %v765 = vpop.xlane.xlu0 %764
  %v766 = vsel %vm723, %v236, -inf
  %767 = vmax.xlane.f32.xlu0 %v766
  %v768 = vpop.xlane.xlu0 %767
  %v769 = vsel %vm723, %v241, -inf
  %770 = vmax.xlane.f32.xlu0 %v769
  %v771 = vpop.xlane.xlu0 %770
  %v772 = vsub.f32 %v166, %v726
  %v773 = vsub.f32 %v171, %v729
  %v774 = vsub.f32 %v176, %v732
  %v775 = vsub.f32 %v181, %v735
  %v776 = vsub.f32 %v186, %v738
  %v777 = vsub.f32 %v191, %v741
  %v778 = vsub.f32 %v196, %v744
  %v779 = vsub.f32 %v201, %v747
  %v780 = vsub.f32 %v206, %v750
  %v781 = vsub.f32 %v211, %v753
  %v782 = vsub.f32 %v216, %v756
  %v783 = vsub.f32 %v221, %v759
  %v784 = vsub.f32 %v226, %v762
  %v785 = vsub.f32 %v231, %v765
  %v786 = vsub.f32 %v236, %v768
  %v787 = vsub.f32 %v241, %v771
  %v788 = vmul.f32 %v772, 1.442695
  %v789 = vpow.pop %v788
  %v790 = vmul.f32 %v773, 1.442695
  %v791 = vpow.pop %v790
  %v792 = vmul.f32 %v774, 1.442695
  %v793 = vpow.pop %v792
  %v794 = vmul.f32 %v775, 1.442695
  %v795 = vpow.pop %v794
  %v796 = vmul.f32 %v776, 1.442695
  %v797 = vpow.pop %v796
  %v798 = vmul.f32 %v777, 1.442695
  %v799 = vpow.pop %v798
  %v800 = vmul.f32 %v778, 1.442695
  %v801 = vpow.pop %v800
  %v802 = vmul.f32 %v779, 1.442695
  %v803 = vpow.pop %v802
  %v804 = vmul.f32 %v780, 1.442695
  %v805 = vpow.pop %v804
  %v806 = vmul.f32 %v781, 1.442695
  %v807 = vpow.pop %v806
  %v808 = vmul.f32 %v782, 1.442695
  %v809 = vpow.pop %v808
  %v810 = vmul.f32 %v783, 1.442695
  %v811 = vpow.pop %v810
  %v812 = vmul.f32 %v784, 1.442695
  %v813 = vpow.pop %v812
  %v814 = vmul.f32 %v785, 1.442695
  %v815 = vpow.pop %v814
  %v816 = vmul.f32 %v786, 1.442695
  %v817 = vpow.pop %v816
  %v818 = vmul.f32 %v787, 1.442695
  %v819 = vpow.pop %v818
  %836 = vrot.lane.b32.xlu0 %v789, 92
  %v837 = vpop.permute.xlu0 %836
  %838 = vrot.lane.b32.xlu0 %v791, 92
  %v839 = vpop.permute.xlu0 %838
  %840 = vrot.lane.b32.xlu0 %v793, 92
  %v841 = vpop.permute.xlu0 %840
  %842 = vrot.lane.b32.xlu0 %v795, 92
  %v843 = vpop.permute.xlu0 %842
  %844 = vrot.lane.b32.xlu0 %v797, 92
  %v845 = vpop.permute.xlu0 %844
  %846 = vrot.lane.b32.xlu0 %v799, 92
  %v847 = vpop.permute.xlu0 %846
  %848 = vrot.lane.b32.xlu0 %v801, 92
  %v849 = vpop.permute.xlu0 %848
  %850 = vrot.lane.b32.xlu0 %v803, 92
  %v851 = vpop.permute.xlu0 %850
  %852 = vrot.lane.b32.xlu0 %v805, 92
  %v853 = vpop.permute.xlu0 %852
  %854 = vrot.lane.b32.xlu0 %v807, 92
  %v855 = vpop.permute.xlu0 %854
  %856 = vrot.lane.b32.xlu0 %v809, 92
  %v857 = vpop.permute.xlu0 %856
  %858 = vrot.lane.b32.xlu0 %v811, 92
  %v859 = vpop.permute.xlu0 %858
  %860 = vrot.lane.b32.xlu0 %v813, 92
  %v861 = vpop.permute.xlu0 %860
  %862 = vrot.lane.b32.xlu0 %v815, 92
  %v863 = vpop.permute.xlu0 %862
  %864 = vrot.lane.b32.xlu0 %v817, 92
  %v865 = vpop.permute.xlu0 %864
  %866 = vrot.lane.b32.xlu0 %v819, 92
  %v867 = vpop.permute.xlu0 %866
  %v884 = vsel %vm284, %v837, 0.0
  %885 = vadd.xlane.f32.xlu0 %v884
  %v886 = vpop.xlane.xlu0 %885
  %v887 = vsel %vm284, %v839, 0.0
  %888 = vadd.xlane.f32.xlu0 %v887
  %v889 = vpop.xlane.xlu0 %888
  %v890 = vsel %vm284, %v841, 0.0
  %891 = vadd.xlane.f32.xlu0 %v890
  %v892 = vpop.xlane.xlu0 %891
  %v893 = vsel %vm284, %v843, 0.0
  %894 = vadd.xlane.f32.xlu0 %v893
  %v895 = vpop.xlane.xlu0 %894
  %v896 = vsel %vm284, %v845, 0.0
  %897 = vadd.xlane.f32.xlu0 %v896
  %v898 = vpop.xlane.xlu0 %897
  %v899 = vsel %vm284, %v847, 0.0
  %900 = vadd.xlane.f32.xlu0 %v899
  %v901 = vpop.xlane.xlu0 %900
  %v902 = vsel %vm284, %v849, 0.0
  %903 = vadd.xlane.f32.xlu0 %v902
  %v904 = vpop.xlane.xlu0 %903
  %v905 = vsel %vm284, %v851, 0.0
  %906 = vadd.xlane.f32.xlu0 %v905
  %v907 = vpop.xlane.xlu0 %906
  %v908 = vsel %vm284, %v853, 0.0
  %909 = vadd.xlane.f32.xlu0 %v908
  %v910 = vpop.xlane.xlu0 %909
  %v911 = vsel %vm284, %v855, 0.0
  %912 = vadd.xlane.f32.xlu0 %v911
  %v913 = vpop.xlane.xlu0 %912
  %v914 = vsel %vm284, %v857, 0.0
  %915 = vadd.xlane.f32.xlu0 %v914
  %v916 = vpop.xlane.xlu0 %915
  %v917 = vsel %vm284, %v859, 0.0
  %918 = vadd.xlane.f32.xlu0 %v917
  %v919 = vpop.xlane.xlu0 %918
  %v920 = vsel %vm284, %v861, 0.0
  %921 = vadd.xlane.f32.xlu0 %v920
  %v922 = vpop.xlane.xlu0 %921
  %v923 = vsel %vm284, %v863, 0.0
  %924 = vadd.xlane.f32.xlu0 %v923
  %v925 = vpop.xlane.xlu0 %924
  %v926 = vsel %vm284, %v865, 0.0
  %927 = vadd.xlane.f32.xlu0 %v926
  %v928 = vpop.xlane.xlu0 %927
  %v929 = vsel %vm284, %v867, 0.0
  %930 = vadd.xlane.f32.xlu0 %v929
  %v931 = vpop.xlane.xlu0 %930
  %v932 = vrcp.pop %v886
  %v933 = vrcp.pop %v889
  %v934 = vrcp.pop %v892
  %v935 = vrcp.pop %v895
  %v936 = vrcp.pop %v898
  %v937 = vrcp.pop %v901
  %v938 = vrcp.pop %v904
  %v939 = vrcp.pop %v907
  %v940 = vrcp.pop %v910
  %v941 = vrcp.pop %v913
  %v942 = vrcp.pop %v916
  %v943 = vrcp.pop %v919
  %v944 = vrcp.pop %v922
  %v945 = vrcp.pop %v925
  %v946 = vrcp.pop %v928
  %v947 = vrcp.pop %v931
  %v948 = vmul.f32 %v789, %v932
  %v949 = vmul.f32 %v791, %v933
  %v950 = vmul.f32 %v793, %v934
  %v951 = vmul.f32 %v795, %v935
  %v952 = vmul.f32 %v797, %v936
  %v953 = vmul.f32 %v799, %v937
  %v954 = vmul.f32 %v801, %v938
  %v955 = vmul.f32 %v803, %v939
  %v956 = vmul.f32 %v805, %v940
  %v957 = vmul.f32 %v807, %v941
  %v958 = vmul.f32 %v809, %v942
  %v959 = vmul.f32 %v811, %v943
  %v960 = vmul.f32 %v813, %v944
  %v961 = vmul.f32 %v815, %v945
  %v962 = vmul.f32 %v817, %v946
  %v963 = vmul.f32 %v819, %v947
  %vm964 = vcmask 359744
  %v965 = vsel %vm964, %v166, -inf
  %966 = vmax.xlane.f32.xlu0 %v965
  %v967 = vpop.xlane.xlu0 %966
  %v968 = vsel %vm964, %v171, -inf
  %969 = vmax.xlane.f32.xlu0 %v968
  %v970 = vpop.xlane.xlu0 %969
  %v971 = vsel %vm964, %v176, -inf
  %972 = vmax.xlane.f32.xlu0 %v971
  %v973 = vpop.xlane.xlu0 %972
  %v974 = vsel %vm964, %v181, -inf
  %975 = vmax.xlane.f32.xlu0 %v974
  %v976 = vpop.xlane.xlu0 %975
  %v977 = vsel %vm964, %v186, -inf
  %978 = vmax.xlane.f32.xlu0 %v977
  %v979 = vpop.xlane.xlu0 %978
  %v980 = vsel %vm964, %v191, -inf
  %981 = vmax.xlane.f32.xlu0 %v980
  %v982 = vpop.xlane.xlu0 %981
  %v983 = vsel %vm964, %v196, -inf
  %984 = vmax.xlane.f32.xlu0 %v983
  %v985 = vpop.xlane.xlu0 %984
  %v986 = vsel %vm964, %v201, -inf
  %987 = vmax.xlane.f32.xlu0 %v986
  %v988 = vpop.xlane.xlu0 %987
  %v989 = vsel %vm964, %v206, -inf
  %990 = vmax.xlane.f32.xlu0 %v989
  %v991 = vpop.xlane.xlu0 %990
  %v992 = vsel %vm964, %v211, -inf
  %993 = vmax.xlane.f32.xlu0 %v992
  %v994 = vpop.xlane.xlu0 %993
  %v995 = vsel %vm964, %v216, -inf
  %996 = vmax.xlane.f32.xlu0 %v995
  %v997 = vpop.xlane.xlu0 %996
  %v998 = vsel %vm964, %v221, -inf
  %999 = vmax.xlane.f32.xlu0 %v998
  %v1000 = vpop.xlane.xlu0 %999
  %v1001 = vsel %vm964, %v226, -inf
  %1002 = vmax.xlane.f32.xlu0 %v1001
  %v1003 = vpop.xlane.xlu0 %1002
  %v1004 = vsel %vm964, %v231, -inf
  %1005 = vmax.xlane.f32.xlu0 %v1004
  %v1006 = vpop.xlane.xlu0 %1005
  %v1007 = vsel %vm964, %v236, -inf
  %1008 = vmax.xlane.f32.xlu0 %v1007
  %v1009 = vpop.xlane.xlu0 %1008
  %v1010 = vsel %vm964, %v241, -inf
  %1011 = vmax.xlane.f32.xlu0 %v1010
  %v1012 = vpop.xlane.xlu0 %1011
  %v1013 = vsub.f32 %v166, %v967
  %v1014 = vsub.f32 %v171, %v970
  %v1015 = vsub.f32 %v176, %v973
  %v1016 = vsub.f32 %v181, %v976
  %v1017 = vsub.f32 %v186, %v979
  %v1018 = vsub.f32 %v191, %v982
  %v1019 = vsub.f32 %v196, %v985
  %v1020 = vsub.f32 %v201, %v988
  %v1021 = vsub.f32 %v206, %v991
  %v1022 = vsub.f32 %v211, %v994
  %v1023 = vsub.f32 %v216, %v997
  %v1024 = vsub.f32 %v221, %v1000
  %v1025 = vsub.f32 %v226, %v1003
  %v1026 = vsub.f32 %v231, %v1006
  %v1027 = vsub.f32 %v236, %v1009
  %v1028 = vsub.f32 %v241, %v1012
  %v1029 = vmul.f32 %v1013, 1.442695
  %v1030 = vpow.pop %v1029
  %v1031 = vmul.f32 %v1014, 1.442695
  %v1032 = vpow.pop %v1031
  %v1033 = vmul.f32 %v1015, 1.442695
  %v1034 = vpow.pop %v1033
  %v1035 = vmul.f32 %v1016, 1.442695
  %v1036 = vpow.pop %v1035
  %v1037 = vmul.f32 %v1017, 1.442695
  %v1038 = vpow.pop %v1037
  %v1039 = vmul.f32 %v1018, 1.442695
  %v1040 = vpow.pop %v1039
  %v1041 = vmul.f32 %v1019, 1.442695
  %v1042 = vpow.pop %v1041
  %v1043 = vmul.f32 %v1020, 1.442695
  %v1044 = vpow.pop %v1043
  %v1045 = vmul.f32 %v1021, 1.442695
  %v1046 = vpow.pop %v1045
  %v1047 = vmul.f32 %v1022, 1.442695
  %v1048 = vpow.pop %v1047
  %v1049 = vmul.f32 %v1023, 1.442695
  %v1050 = vpow.pop %v1049
  %v1051 = vmul.f32 %v1024, 1.442695
  %v1052 = vpow.pop %v1051
  %v1053 = vmul.f32 %v1025, 1.442695
  %v1054 = vpow.pop %v1053
  %v1055 = vmul.f32 %v1026, 1.442695
  %v1056 = vpow.pop %v1055
  %v1057 = vmul.f32 %v1027, 1.442695
  %v1058 = vpow.pop %v1057
  %v1059 = vmul.f32 %v1028, 1.442695
  %v1060 = vpow.pop %v1059
  %1077 = vrot.lane.b32.xlu0 %v1030, 88
  %v1078 = vpop.permute.xlu0 %1077
  %1079 = vrot.lane.b32.xlu0 %v1032, 88
  %v1080 = vpop.permute.xlu0 %1079
  %1081 = vrot.lane.b32.xlu0 %v1034, 88
  %v1082 = vpop.permute.xlu0 %1081
  %1083 = vrot.lane.b32.xlu0 %v1036, 88
  %v1084 = vpop.permute.xlu0 %1083
  %1085 = vrot.lane.b32.xlu0 %v1038, 88
  %v1086 = vpop.permute.xlu0 %1085
  %1087 = vrot.lane.b32.xlu0 %v1040, 88
  %v1088 = vpop.permute.xlu0 %1087
  %1089 = vrot.lane.b32.xlu0 %v1042, 88
  %v1090 = vpop.permute.xlu0 %1089
  %1091 = vrot.lane.b32.xlu0 %v1044, 88
  %v1092 = vpop.permute.xlu0 %1091
  %1093 = vrot.lane.b32.xlu0 %v1046, 88
  %v1094 = vpop.permute.xlu0 %1093
  %1095 = vrot.lane.b32.xlu0 %v1048, 88
  %v1096 = vpop.permute.xlu0 %1095
  %1097 = vrot.lane.b32.xlu0 %v1050, 88
  %v1098 = vpop.permute.xlu0 %1097
  %1099 = vrot.lane.b32.xlu0 %v1052, 88
  %v1100 = vpop.permute.xlu0 %1099
  %1101 = vrot.lane.b32.xlu0 %v1054, 88
  %v1102 = vpop.permute.xlu0 %1101
  %1103 = vrot.lane.b32.xlu0 %v1056, 88
  %v1104 = vpop.permute.xlu0 %1103
  %1105 = vrot.lane.b32.xlu0 %v1058, 88
  %v1106 = vpop.permute.xlu0 %1105
  %1107 = vrot.lane.b32.xlu0 %v1060, 88
  %v1108 = vpop.permute.xlu0 %1107
  %v1125 = vsel %vm284, %v1078, 0.0
  %1126 = vadd.xlane.f32.xlu0 %v1125
  %v1127 = vpop.xlane.xlu0 %1126
  %v1128 = vsel %vm284, %v1080, 0.0
  %1129 = vadd.xlane.f32.xlu0 %v1128
  %v1130 = vpop.xlane.xlu0 %1129
  %v1131 = vsel %vm284, %v1082, 0.0
  %1132 = vadd.xlane.f32.xlu0 %v1131
  %v1133 = vpop.xlane.xlu0 %1132
  %v1134 = vsel %vm284, %v1084, 0.0
  %1135 = vadd.xlane.f32.xlu0 %v1134
  %v1136 = vpop.xlane.xlu0 %1135
  %v1137 = vsel %vm284, %v1086, 0.0
  %1138 = vadd.xlane.f32.xlu0 %v1137
  %v1139 = vpop.xlane.xlu0 %1138
  %v1140 = vsel %vm284, %v1088, 0.0
  %1141 = vadd.xlane.f32.xlu0 %v1140
  %v1142 = vpop.xlane.xlu0 %1141
  %v1143 = vsel %vm284, %v1090, 0.0
  %1144 = vadd.xlane.f32.xlu0 %v1143
  %v1145 = vpop.xlane.xlu0 %1144
  %v1146 = vsel %vm284, %v1092, 0.0
  %1147 = vadd.xlane.f32.xlu0 %v1146
  %v1148 = vpop.xlane.xlu0 %1147
  %v1149 = vsel %vm284, %v1094, 0.0
  %1150 = vadd.xlane.f32.xlu0 %v1149
  %v1151 = vpop.xlane.xlu0 %1150
  %v1152 = vsel %vm284, %v1096, 0.0
  %1153 = vadd.xlane.f32.xlu0 %v1152
  %v1154 = vpop.xlane.xlu0 %1153
  %v1155 = vsel %vm284, %v1098, 0.0
  %1156 = vadd.xlane.f32.xlu0 %v1155
  %v1157 = vpop.xlane.xlu0 %1156
  %v1158 = vsel %vm284, %v1100, 0.0
  %1159 = vadd.xlane.f32.xlu0 %v1158
  %v1160 = vpop.xlane.xlu0 %1159
  %v1161 = vsel %vm284, %v1102, 0.0
  %1162 = vadd.xlane.f32.xlu0 %v1161
  %v1163 = vpop.xlane.xlu0 %1162
  %v1164 = vsel %vm284, %v1104, 0.0
  %1165 = vadd.xlane.f32.xlu0 %v1164
  %v1166 = vpop.xlane.xlu0 %1165
  %v1167 = vsel %vm284, %v1106, 0.0
  %1168 = vadd.xlane.f32.xlu0 %v1167
  %v1169 = vpop.xlane.xlu0 %1168
  %v1170 = vsel %vm284, %v1108, 0.0
  %1171 = vadd.xlane.f32.xlu0 %v1170
  %v1172 = vpop.xlane.xlu0 %1171
  %v1173 = vrcp.pop %v1127
  %v1174 = vrcp.pop %v1130
  %v1175 = vrcp.pop %v1133
  %v1176 = vrcp.pop %v1136
  %v1177 = vrcp.pop %v1139
  %v1178 = vrcp.pop %v1142
  %v1179 = vrcp.pop %v1145
  %v1180 = vrcp.pop %v1148
  %v1181 = vrcp.pop %v1151
  %v1182 = vrcp.pop %v1154
  %v1183 = vrcp.pop %v1157
  %v1184 = vrcp.pop %v1160
  %v1185 = vrcp.pop %v1163
  %v1186 = vrcp.pop %v1166
  %v1187 = vrcp.pop %v1169
  %v1188 = vrcp.pop %v1172
  %v1189 = vmul.f32 %v1030, %v1173
  %v1190 = vmul.f32 %v1032, %v1174
  %v1191 = vmul.f32 %v1034, %v1175
  %v1192 = vmul.f32 %v1036, %v1176
  %v1193 = vmul.f32 %v1038, %v1177
  %v1194 = vmul.f32 %v1040, %v1178
  %v1195 = vmul.f32 %v1042, %v1179
  %v1196 = vmul.f32 %v1044, %v1180
  %v1197 = vmul.f32 %v1046, %v1181
  %v1198 = vmul.f32 %v1048, %v1182
  %v1199 = vmul.f32 %v1050, %v1183
  %v1200 = vmul.f32 %v1052, %v1184
  %v1201 = vmul.f32 %v1054, %v1185
  %v1202 = vmul.f32 %v1056, %v1186
  %v1203 = vmul.f32 %v1058, %v1187
  %v1204 = vmul.f32 %v1060, %v1188
  %vm1205 = vcmask 392544
  %v1206 = vsel %vm1205, %v166, -inf
  %1207 = vmax.xlane.f32.xlu0 %v1206
  %v1208 = vpop.xlane.xlu0 %1207
  %v1209 = vsel %vm1205, %v171, -inf
  %1210 = vmax.xlane.f32.xlu0 %v1209
  %v1211 = vpop.xlane.xlu0 %1210
  %v1212 = vsel %vm1205, %v176, -inf
  %1213 = vmax.xlane.f32.xlu0 %v1212
  %v1214 = vpop.xlane.xlu0 %1213
  %v1215 = vsel %vm1205, %v181, -inf
  %1216 = vmax.xlane.f32.xlu0 %v1215
  %v1217 = vpop.xlane.xlu0 %1216
  %v1218 = vsel %vm1205, %v186, -inf
  %1219 = vmax.xlane.f32.xlu0 %v1218
  %v1220 = vpop.xlane.xlu0 %1219
  %v1221 = vsel %vm1205, %v191, -inf
  %1222 = vmax.xlane.f32.xlu0 %v1221
  %v1223 = vpop.xlane.xlu0 %1222
  %v1224 = vsel %vm1205, %v196, -inf
  %1225 = vmax.xlane.f32.xlu0 %v1224
  %v1226 = vpop.xlane.xlu0 %1225
  %v1227 = vsel %vm1205, %v201, -inf
  %1228 = vmax.xlane.f32.xlu0 %v1227
  %v1229 = vpop.xlane.xlu0 %1228
  %v1230 = vsel %vm1205, %v206, -inf
  %1231 = vmax.xlane.f32.xlu0 %v1230
  %v1232 = vpop.xlane.xlu0 %1231
  %v1233 = vsel %vm1205, %v211, -inf
  %1234 = vmax.xlane.f32.xlu0 %v1233
  %v1235 = vpop.xlane.xlu0 %1234
  %v1236 = vsel %vm1205, %v216, -inf
  %1237 = vmax.xlane.f32.xlu0 %v1236
  %v1238 = vpop.xlane.xlu0 %1237
  %v1239 = vsel %vm1205, %v221, -inf
  %1240 = vmax.xlane.f32.xlu0 %v1239
  %v1241 = vpop.xlane.xlu0 %1240
  %v1242 = vsel %vm1205, %v226, -inf
  %1243 = vmax.xlane.f32.xlu0 %v1242
  %v1244 = vpop.xlane.xlu0 %1243
  %v1245 = vsel %vm1205, %v231, -inf
  %1246 = vmax.xlane.f32.xlu0 %v1245
  %v1247 = vpop.xlane.xlu0 %1246
  %v1248 = vsel %vm1205, %v236, -inf
  %1249 = vmax.xlane.f32.xlu0 %v1248
  %v1250 = vpop.xlane.xlu0 %1249
  %v1251 = vsel %vm1205, %v241, -inf
  %1252 = vmax.xlane.f32.xlu0 %v1251
  %v1253 = vpop.xlane.xlu0 %1252
  %v1254 = vsub.f32 %v166, %v1208
  %v1255 = vsub.f32 %v171, %v1211
  %v1256 = vsub.f32 %v176, %v1214
  %v1257 = vsub.f32 %v181, %v1217
  %v1258 = vsub.f32 %v186, %v1220
  %v1259 = vsub.f32 %v191, %v1223
  %v1260 = vsub.f32 %v196, %v1226
  %v1261 = vsub.f32 %v201, %v1229
  %v1262 = vsub.f32 %v206, %v1232
  %v1263 = vsub.f32 %v211, %v1235
  %v1264 = vsub.f32 %v216, %v1238
  %v1265 = vsub.f32 %v221, %v1241
  %v1266 = vsub.f32 %v226, %v1244
  %v1267 = vsub.f32 %v231, %v1247
  %v1268 = vsub.f32 %v236, %v1250
  %v1269 = vsub.f32 %v241, %v1253
  %v1270 = vmul.f32 %v1254, 1.442695
  %v1271 = vpow.pop %v1270
  %v1272 = vmul.f32 %v1255, 1.442695
  %v1273 = vpow.pop %v1272
  %v1274 = vmul.f32 %v1256, 1.442695
  %v1275 = vpow.pop %v1274
  %v1276 = vmul.f32 %v1257, 1.442695
  %v1277 = vpow.pop %v1276
  %v1278 = vmul.f32 %v1258, 1.442695
  %v1279 = vpow.pop %v1278
  %v1280 = vmul.f32 %v1259, 1.442695
  %v1281 = vpow.pop %v1280
  %v1282 = vmul.f32 %v1260, 1.442695
  %v1283 = vpow.pop %v1282
  %v1284 = vmul.f32 %v1261, 1.442695
  %v1285 = vpow.pop %v1284
  %v1286 = vmul.f32 %v1262, 1.442695
  %v1287 = vpow.pop %v1286
  %v1288 = vmul.f32 %v1263, 1.442695
  %v1289 = vpow.pop %v1288
  %v1290 = vmul.f32 %v1264, 1.442695
  %v1291 = vpow.pop %v1290
  %v1292 = vmul.f32 %v1265, 1.442695
  %v1293 = vpow.pop %v1292
  %v1294 = vmul.f32 %v1266, 1.442695
  %v1295 = vpow.pop %v1294
  %v1296 = vmul.f32 %v1267, 1.442695
  %v1297 = vpow.pop %v1296
  %v1298 = vmul.f32 %v1268, 1.442695
  %v1299 = vpow.pop %v1298
  %v1300 = vmul.f32 %v1269, 1.442695
  %v1301 = vpow.pop %v1300
  %1318 = vrot.lane.b32.xlu0 %v1271, 84
  %v1319 = vpop.permute.xlu0 %1318
  %1320 = vrot.lane.b32.xlu0 %v1273, 84
  %v1321 = vpop.permute.xlu0 %1320
  %1322 = vrot.lane.b32.xlu0 %v1275, 84
  %v1323 = vpop.permute.xlu0 %1322
  %1324 = vrot.lane.b32.xlu0 %v1277, 84
  %v1325 = vpop.permute.xlu0 %1324
  %1326 = vrot.lane.b32.xlu0 %v1279, 84
  %v1327 = vpop.permute.xlu0 %1326
  %1328 = vrot.lane.b32.xlu0 %v1281, 84
  %v1329 = vpop.permute.xlu0 %1328
  %1330 = vrot.lane.b32.xlu0 %v1283, 84
  %v1331 = vpop.permute.xlu0 %1330
  %1332 = vrot.lane.b32.xlu0 %v1285, 84
  %v1333 = vpop.permute.xlu0 %1332
  %1334 = vrot.lane.b32.xlu0 %v1287, 84
  %v1335 = vpop.permute.xlu0 %1334
  %1336 = vrot.lane.b32.xlu0 %v1289, 84
  %v1337 = vpop.permute.xlu0 %1336
  %1338 = vrot.lane.b32.xlu0 %v1291, 84
  %v1339 = vpop.permute.xlu0 %1338
  %1340 = vrot.lane.b32.xlu0 %v1293, 84
  %v1341 = vpop.permute.xlu0 %1340
  %1342 = vrot.lane.b32.xlu0 %v1295, 84
  %v1343 = vpop.permute.xlu0 %1342
  %1344 = vrot.lane.b32.xlu0 %v1297, 84
  %v1345 = vpop.permute.xlu0 %1344
  %1346 = vrot.lane.b32.xlu0 %v1299, 84
  %v1347 = vpop.permute.xlu0 %1346
  %1348 = vrot.lane.b32.xlu0 %v1301, 84
  %v1349 = vpop.permute.xlu0 %1348
  %v1366 = vsel %vm284, %v1319, 0.0
  %1367 = vadd.xlane.f32.xlu0 %v1366
  %v1368 = vpop.xlane.xlu0 %1367
  %v1369 = vsel %vm284, %v1321, 0.0
  %1370 = vadd.xlane.f32.xlu0 %v1369
  %v1371 = vpop.xlane.xlu0 %1370
  %v1372 = vsel %vm284, %v1323, 0.0
  %1373 = vadd.xlane.f32.xlu0 %v1372
  %v1374 = vpop.xlane.xlu0 %1373
  %v1375 = vsel %vm284, %v1325, 0.0
  %1376 = vadd.xlane.f32.xlu0 %v1375
  %v1377 = vpop.xlane.xlu0 %1376
  %v1378 = vsel %vm284, %v1327, 0.0
  %1379 = vadd.xlane.f32.xlu0 %v1378
  %v1380 = vpop.xlane.xlu0 %1379
  %v1381 = vsel %vm284, %v1329, 0.0
  %1382 = vadd.xlane.f32.xlu0 %v1381
  %v1383 = vpop.xlane.xlu0 %1382
  %v1384 = vsel %vm284, %v1331, 0.0
  %1385 = vadd.xlane.f32.xlu0 %v1384
  %v1386 = vpop.xlane.xlu0 %1385
  %v1387 = vsel %vm284, %v1333, 0.0
  %1388 = vadd.xlane.f32.xlu0 %v1387
  %v1389 = vpop.xlane.xlu0 %1388
  %v1390 = vsel %vm284, %v1335, 0.0
  %1391 = vadd.xlane.f32.xlu0 %v1390
  %v1392 = vpop.xlane.xlu0 %1391
  %v1393 = vsel %vm284, %v1337, 0.0
  %1394 = vadd.xlane.f32.xlu0 %v1393
  %v1395 = vpop.xlane.xlu0 %1394
  %v1396 = vsel %vm284, %v1339, 0.0
  %1397 = vadd.xlane.f32.xlu0 %v1396
  %v1398 = vpop.xlane.xlu0 %1397
  %v1399 = vsel %vm284, %v1341, 0.0
  %1400 = vadd.xlane.f32.xlu0 %v1399
  %v1401 = vpop.xlane.xlu0 %1400
  %v1402 = vsel %vm284, %v1343, 0.0
  %1403 = vadd.xlane.f32.xlu0 %v1402
  %v1404 = vpop.xlane.xlu0 %1403
  %v1405 = vsel %vm284, %v1345, 0.0
  %1406 = vadd.xlane.f32.xlu0 %v1405
  %v1407 = vpop.xlane.xlu0 %1406
  %v1408 = vsel %vm284, %v1347, 0.0
  %1409 = vadd.xlane.f32.xlu0 %v1408
  %v1410 = vpop.xlane.xlu0 %1409
  %v1411 = vsel %vm284, %v1349, 0.0
  %1412 = vadd.xlane.f32.xlu0 %v1411
  %v1413 = vpop.xlane.xlu0 %1412
  %v1414 = vrcp.pop %v1368
  %v1415 = vrcp.pop %v1371
  %v1416 = vrcp.pop %v1374
  %v1417 = vrcp.pop %v1377
  %v1418 = vrcp.pop %v1380
  %v1419 = vrcp.pop %v1383
  %v1420 = vrcp.pop %v1386
  %v1421 = vrcp.pop %v1389
  %v1422 = vrcp.pop %v1392
  %v1423 = vrcp.pop %v1395
  %v1424 = vrcp.pop %v1398
  %v1425 = vrcp.pop %v1401
  %v1426 = vrcp.pop %v1404
  %v1427 = vrcp.pop %v1407
  %v1428 = vrcp.pop %v1410
  %v1429 = vrcp.pop %v1413
  %v1430 = vmul.f32 %v1271, %v1414
  %v1431 = vmul.f32 %v1273, %v1415
  %v1432 = vmul.f32 %v1275, %v1416
  %v1433 = vmul.f32 %v1277, %v1417
  %v1434 = vmul.f32 %v1279, %v1418
  %v1435 = vmul.f32 %v1281, %v1419
  %v1436 = vmul.f32 %v1283, %v1420
  %v1437 = vmul.f32 %v1285, %v1421
  %v1438 = vmul.f32 %v1287, %v1422
  %v1439 = vmul.f32 %v1289, %v1423
  %v1440 = vmul.f32 %v1291, %v1424
  %v1441 = vmul.f32 %v1293, %v1425
  %v1442 = vmul.f32 %v1295, %v1426
  %v1443 = vmul.f32 %v1297, %v1427
  %v1444 = vmul.f32 %v1299, %v1428
  %v1445 = vmul.f32 %v1301, %v1429
  %v1446 = vsel %vm50, %v404, %v707
  %v1447 = vsel %vm50, %v409, %v708
  %v1448 = vsel %vm50, %v414, %v709
  %v1449 = vsel %vm50, %v419, %v710
  %v1450 = vsel %vm50, %v424, %v711
  %v1451 = vsel %vm50, %v429, %v712
  %v1452 = vsel %vm50, %v434, %v713
  %v1453 = vsel %vm50, %v439, %v714
  %v1454 = vsel %vm50, %v444, %v715
  %v1455 = vsel %vm50, %v449, %v716
  %v1456 = vsel %vm50, %v454, %v717
  %v1457 = vsel %vm50, %v459, %v718
  %v1458 = vsel %vm50, %v464, %v719
  %v1459 = vsel %vm50, %v469, %v720
  %v1460 = vsel %vm50, %v474, %v721
  %v1461 = vsel %vm50, %v479, %v722
  %vm1462 = vcmask 293888
  %v1463 = vsel %vm1462, %v1446, %v948
  %v1464 = vsel %vm1462, %v1447, %v949
  %v1465 = vsel %vm1462, %v1448, %v950
  %v1466 = vsel %vm1462, %v1449, %v951
  %v1467 = vsel %vm1462, %v1450, %v952
  %v1468 = vsel %vm1462, %v1451, %v953
  %v1469 = vsel %vm1462, %v1452, %v954
  %v1470 = vsel %vm1462, %v1453, %v955
  %v1471 = vsel %vm1462, %v1454, %v956
  %v1472 = vsel %vm1462, %v1455, %v957
  %v1473 = vsel %vm1462, %v1456, %v958
  %v1474 = vsel %vm1462, %v1457, %v959
  %v1475 = vsel %vm1462, %v1458, %v960
  %v1476 = vsel %vm1462, %v1459, %v961
  %v1477 = vsel %vm1462, %v1460, %v962
  %v1478 = vsel %vm1462, %v1461, %v963
  %vm1479 = vcmask 326656
  %v1480 = vsel %vm1479, %v1463, %v1189
  %v1481 = vsel %vm1479, %v1464, %v1190
  %v1482 = vsel %vm1479, %v1465, %v1191
  %v1483 = vsel %vm1479, %v1466, %v1192
  %v1484 = vsel %vm1479, %v1467, %v1193
  %v1485 = vsel %vm1479, %v1468, %v1194
  %v1486 = vsel %vm1479, %v1469, %v1195
  %v1487 = vsel %vm1479, %v1470, %v1196
  %v1488 = vsel %vm1479, %v1471, %v1197
  %v1489 = vsel %vm1479, %v1472, %v1198
  %v1490 = vsel %vm1479, %v1473, %v1199
  %v1491 = vsel %vm1479, %v1474, %v1200
  %v1492 = vsel %vm1479, %v1475, %v1201
  %v1493 = vsel %vm1479, %v1476, %v1202
  %v1494 = vsel %vm1479, %v1477, %v1203
  %v1495 = vsel %vm1479, %v1478, %v1204
  %vm1496 = vcmask 359424
  %v1497 = vsel %vm1496, %v1480, %v1430
  %v1498 = vsel %vm1496, %v1481, %v1431
  %v1499 = vsel %vm1496, %v1482, %v1432
  %v1500 = vsel %vm1496, %v1483, %v1433
  %v1501 = vsel %vm1496, %v1484, %v1434
  %v1502 = vsel %vm1496, %v1485, %v1435
  %v1503 = vsel %vm1496, %v1486, %v1436
  %v1504 = vsel %vm1496, %v1487, %v1437
  %v1505 = vsel %vm1496, %v1488, %v1438
  %v1506 = vsel %vm1496, %v1489, %v1439
  %v1507 = vsel %vm1496, %v1490, %v1440
  %v1508 = vsel %vm1496, %v1491, %v1441
  %v1509 = vsel %vm1496, %v1492, %v1442
  %v1510 = vsel %vm1496, %v1493, %v1443
  %v1511 = vsel %vm1496, %v1494, %v1444
  %v1512 = vsel %vm1496, %v1495, %v1445
  %vm1513 = vcmask 392192
  %1514 = vst.msk [vmem:[%s6] sm:$0xff] %vm1513, %v1497
  %1515 = vst.msk [vmem:[%s6 + $0x8] sm:$0xff] %vm1513, %v1498
  %1516 = vst.msk [vmem:[%s6 + $0x10] sm:$0xff] %vm1513, %v1499
  %1517 = vst.msk [vmem:[%s6 + $0x18] sm:$0xff] %vm1513, %v1500
  %1518 = vst.msk [vmem:[%s6 + $0x20] sm:$0xff] %vm1513, %v1501
  %1519 = vst.msk [vmem:[%s6 + $0x28] sm:$0xff] %vm1513, %v1502
  %1520 = vst.msk [vmem:[%s6 + $0x30] sm:$0xff] %vm1513, %v1503
  %1521 = vst.msk [vmem:[%s6 + $0x38] sm:$0xff] %vm1513, %v1504
  %1522 = vst.msk [vmem:[%s6 + $0x40] sm:$0xff] %vm1513, %v1505
  %1523 = vst.msk [vmem:[%s6 + $0x48] sm:$0xff] %vm1513, %v1506
  %1524 = vst.msk [vmem:[%s6 + $0x50] sm:$0xff] %vm1513, %v1507
  %1525 = vst.msk [vmem:[%s6 + $0x58] sm:$0xff] %vm1513, %v1508
  %1526 = vst.msk [vmem:[%s6 + $0x60] sm:$0xff] %vm1513, %v1509
  %1527 = vst.msk [vmem:[%s6 + $0x68] sm:$0xff] %vm1513, %v1510
  %1528 = vst.msk [vmem:[%s6 + $0x70] sm:$0xff] %vm1513, %v1511
  %1529 = vst.msk [vmem:[%s6 + $0x78] sm:$0xff] %vm1513, %v1512
  // Predicated region
  $region26: #{tpu_custom_call.1} parent=0 // pred_check
    _
  $region27: #{tpu_custom_call.1} parent=0 // pred_check_branch
    %1531 = sbr.rel (0) target = $region29
  $region28: #{tpu_custom_call.1} parent=0 // pred_region
    _
  $region29: #{tpu_custom_call.1} parent=0 // pred_fallthru
    _
  // Predicated region
  $region30: #{tpu_custom_call.1} parent=0 // pred_check
    _
  $region31: #{tpu_custom_call.1} parent=0 // pred_check_branch
    %1533 = sbr.rel (0) target = $region33
  $region32: #{tpu_custom_call.1} parent=0 // pred_region
    _
  $region33: #{tpu_custom_call.1} parent=0 // pred_fallthru
    _

</llo_original>
